<compile_context>
chip_gen: v5e
topology: v5e:2x2
jax: 0.10.0
libtpu: 0.0.40
codegen_flags: <defaults>
</compile_context>

<pallas_src>
import jax
import jax.numpy as jnp
import numpy as np
from jax.experimental import pallas as pl
from jax.experimental.pallas import tpu as pltpu

# ------------------------ model hyper-parameters --------------------------
NUM_LAYERS = 3          # GatedGraphConv layers
HIDDEN = 32             # hidden1
F_IN = 4                # args.input_feat_dim
N_NODES = 16            # nodes per graph-batch
N_GRAPHS = 2            # graphs per graph-batch (8 nodes each)
N_BATCHES = 4           # independent graph-batches total
BATCHES_PER_STEP = 2    # graph-batches stacked (block-diagonally) per grid step
M_STEP = BATCHES_PER_STEP * N_NODES     # matmul row dim per step (32)
OUT_LANES = 128         # lane-dense output row width

# ---------------- packed parameter slab layout (bf16, 176 x 256) -----------
# Per-layer GRU block: cols [0,96) hold the pre-folded Wg_l @ [Wir|Wiz|Win],
# cols [128,224) hold [Whr|Whz|Whn] (128-aligned so slices stay tile-aligned).
SLAB_COLS = 256
COL_HH = 128
G3 = 3 * HIDDEN          # 96
ROW_W1 = 0               # rows [0,4)     cols [0,32)  : w1 (F_IN, H)
ROW_B1 = 8               # row 8          cols [0,32)  : b1
ROW_WF = 16              # rows [16,112)  per-layer fused gate weights (H, 6H)
ROW_BG = 112             # row 112: bih at cols [0,96), bhh at cols [128,224)
ROW_WL1 = 120            # rows [120,152) cols [0,32)  : wl1 (H, H)
ROW_BL1 = 152            # row 152        cols [0,32)  : bl1
ROW_WL2 = 160            # row 160: wl2^T in lanes [0,H), bl2 at lane H
SLAB_ROWS = 176


def _leaky(x):
    return jnp.where(x > 0, x, 0.01 * x)


def erdos_kernel(x_ref, s_ref, a_ref, bm_ref, p_ref, out_ref):
    f32 = jnp.float32
    bf16 = jnp.bfloat16

    x = x_ref[...]                    # (M, F_IN)  fp32
    s = s_ref[...]                    # (M, M)     block-diag GCN-normalized adj
    a = a_ref[...]                    # (M, M)     block-diag adjacency (0/1)
    bm = bm_ref[...]                  # (M, B)     node -> graph-batch one-hot
    s_bf = s.astype(bf16)             # aggregation matmuls in bf16, fp32 accum
    a_bf = a.astype(bf16)

    # ---- parameter slab slices (bf16 resident; biases upcast once) ----
    w1 = p_ref[ROW_W1:ROW_W1 + F_IN, 0:HIDDEN]                        # (F_IN, H)
    b1 = p_ref[ROW_B1:ROW_B1 + 1, 0:HIDDEN].astype(f32)               # (1, H)
    bih = p_ref[ROW_BG:ROW_BG + 1, 0:G3].astype(f32)                  # (1, 3H)
    bhh = p_ref[ROW_BG:ROW_BG + 1, COL_HH:COL_HH + G3].astype(f32)    # (1, 3H)
    wl1 = p_ref[ROW_WL1:ROW_WL1 + HIDDEN, 0:HIDDEN]                   # (H, H)
    bl1 = p_ref[ROW_BL1:ROW_BL1 + 1, 0:HIDDEN].astype(f32)            # (1, H)
    wl2_row = p_ref[ROW_WL2:ROW_WL2 + 1, 0:HIDDEN]                    # (1, H) = wl2^T
    bl2 = p_ref[ROW_WL2:ROW_WL2 + 1, HIDDEN:HIDDEN + 1].astype(f32)   # (1, 1)

    # ---- conv1 = GCNConv(F_IN, H) + leaky_relu (bias AFTER propagation) ----
    xw = jnp.dot(x.astype(bf16), w1, preferred_element_type=f32)      # (M, H)
    h = jnp.dot(s_bf, xw.astype(bf16), preferred_element_type=f32) + b1
    h = _leaky(h)

    # ---- GatedGraphConv(H, NUM_LAYERS) + leaky_relu + residual ----
    # One fused MXU push per layer: t = g @ [Wg_l@Wih | Whh]
    #   gi = A @ t[:, :3H] + bih     (== A @ (g@Wg_l) @ Wih + bih)
    #   gh = t[:, 3H:]   + bhh       (== g @ Whh + bhh)
    g = h
    for l in range(NUM_LAYERS):
        r0 = ROW_WF + l * HIDDEN
        wf = p_ref[r0:r0 + HIDDEN, :]                                  # (H, 256)
        t = jnp.dot(g.astype(bf16), wf, preferred_element_type=f32)   # (M, 256)
        gi = jnp.dot(a_bf, t[:, 0:G3].astype(bf16),
                     preferred_element_type=f32) + bih                # (M, 3H)
        gh = t[:, COL_HH:COL_HH + G3] + bhh                           # (M, 3H)
        r = jax.nn.sigmoid(gi[:, 0:HIDDEN] + gh[:, 0:HIDDEN])
        z = jax.nn.sigmoid(gi[:, HIDDEN:2 * HIDDEN] + gh[:, HIDDEN:2 * HIDDEN])
        n = jnp.tanh(gi[:, 2 * HIDDEN:G3] + r * gh[:, 2 * HIDDEN:G3])
        g = (1.0 - z) * n + z * g
    h = _leaky(g) + h

    # ---- lin1 + leaky_relu ----
    h = _leaky(jnp.dot(h.astype(bf16), wl1, preferred_element_type=f32) + bl1)

    # ---- lane-major tail: logits / probs / losses as (1, M)/(1, B) rows ----
    # logits_row = wl2^T @ h^T via an NT dot (contract last dims of both).
    logits = jax.lax.dot_general(
        wl2_row, h.astype(bf16),
        dimension_numbers=(((1,), (1,)), ((), ())),
        preferred_element_type=f32) + bl2                              # (1, M)
    p_row = jax.nn.sigmoid(logits)                                     # (1, M)

    # max-cut loss per graph-batch (fp32 path).  The per-batch mean over its
    # G graphs folds into a single per-batch node sum because the loss is
    # linear in the per-graph expected degree / weight.
    deg_row = jnp.sum(a, axis=0, keepdims=True)                        # (1, M) (a symmetric)
    mp_row = jnp.dot(p_row, a, preferred_element_type=f32)             # (1, M)
    vals = p_row * (deg_row - mp_row)                                  # (1, M)
    loss_row = jnp.dot(vals, bm, preferred_element_type=f32) * (-0.5 / N_GRAPHS)  # (1, B)

    # ---- single dense (1, 128) store: probs in [0,M), losses in [M,M+B) ----
    pad = jnp.zeros((1, OUT_LANES - M_STEP - BATCHES_PER_STEP), f32)
    out_ref[...] = jnp.concatenate([p_row, loss_row, pad], axis=1)


def pack_params(params):
    """Pack all parameters into one (SLAB_ROWS, SLAB_COLS) bf16 slab, with the
    GatedGraphConv weight pre-folded into the GRU input weight per layer."""
    slab = jnp.zeros((SLAB_ROWS, SLAB_COLS), jnp.float32)
    slab = slab.at[ROW_W1:ROW_W1 + F_IN, 0:HIDDEN].set(params["w1"])
    slab = slab.at[ROW_B1, 0:HIDDEN].set(params["b1"][0])
    wih_wide = jnp.concatenate([params["wih"][k] for k in range(3)], axis=1)  # (H, 3H)
    whh_wide = jnp.concatenate([params["whh"][k] for k in range(3)], axis=1)  # (H, 3H)
    bih_wide = jnp.concatenate([params["bih"][k] for k in range(3)], axis=1)  # (1, 3H)
    bhh_wide = jnp.concatenate([params["bhh"][k] for k in range(3)], axis=1)  # (1, 3H)
    for l in range(NUM_LAYERS):
        wfold = params["wg"][l] @ wih_wide          # pre-folded Wg_l @ [Wir|Wiz|Win]
        r0 = ROW_WF + l * HIDDEN
        slab = slab.at[r0:r0 + HIDDEN, 0:G3].set(wfold)
        slab = slab.at[r0:r0 + HIDDEN, COL_HH:COL_HH + G3].set(whh_wide)
    slab = slab.at[ROW_BG, 0:G3].set(bih_wide[0])
    slab = slab.at[ROW_BG, COL_HH:COL_HH + G3].set(bhh_wide[0])
    slab = slab.at[ROW_WL1:ROW_WL1 + HIDDEN, 0:HIDDEN].set(params["wl1"])
    slab = slab.at[ROW_BL1, 0:HIDDEN].set(params["bl1"][0])
    slab = slab.at[ROW_WL2, 0:HIDDEN].set(params["wl2"][:, 0])
    slab = slab.at[ROW_WL2, HIDDEN].set(params["bl2"][0, 0])
    return slab.astype(jnp.bfloat16)


def stack_batches(x, s, a):
    """Pack BATCHES_PER_STEP graph-batches per grid step: node features are
    row-stacked, adjacencies become block-diagonal (no cross-batch messages),
    and the node->batch one-hot is emitted pre-transposed as (M, B)."""
    b = x.shape[0]
    steps = b // BATCHES_PER_STEP
    x_st = x.reshape(steps, M_STEP, F_IN)

    def blockdiag(mats):                            # (BPS, N, N) -> (M, M)
        out = jnp.zeros((M_STEP, M_STEP), mats.dtype)
        for k in range(BATCHES_PER_STEP):
            sl = slice(k * N_NODES, (k + 1) * N_NODES)
            out = out.at[sl, sl].set(mats[k])
        return out

    s_st = jnp.stack([blockdiag(s[t * BATCHES_PER_STEP:(t + 1) * BATCHES_PER_STEP])
                      for t in range(steps)])
    a_st = jnp.stack([blockdiag(a[t * BATCHES_PER_STEP:(t + 1) * BATCHES_PER_STEP])
                      for t in range(steps)])
    node_batch = jnp.repeat(jnp.arange(BATCHES_PER_STEP), N_NODES)
    bm_t = (node_batch[:, None]
            == jnp.arange(BATCHES_PER_STEP)[None, :]).astype(jnp.float32)  # (M, B)
    bm_st = jnp.broadcast_to(bm_t, (steps, M_STEP, BATCHES_PER_STEP))
    return x_st, s_st, a_st, bm_st


def erdos_forward(x, s, a, param_slab):
    b = x.shape[0]
    assert b % BATCHES_PER_STEP == 0
    steps = b // BATCHES_PER_STEP
    x_st, s_st, a_st, bm_st = stack_batches(x, s, a)

    m = M_STEP
    flops_per_step = 2 * (
        m * F_IN * HIDDEN                                   # x @ w1
        + m * m * HIDDEN                                    # s @ xw
        + NUM_LAYERS * (m * HIDDEN * 6 * HIDDEN             # g @ wfused
                        + m * m * G3)                       # A @ gate-input
        + m * HIDDEN * HIDDEN                               # lin1
        + m * HIDDEN                                        # lin2
        + m * m                                             # p @ A (loss)
        + m * BATCHES_PER_STEP)                             # vals @ bm
    cost = pl.CostEstimate(
        flops=steps * flops_per_step,
        transcendentals=steps * (3 * NUM_LAYERS * m * HIDDEN + m),
        bytes_accessed=(steps * 4 * (m * F_IN + 2 * m * m
                                     + m * BATCHES_PER_STEP + OUT_LANES)
                        + 2 * SLAB_ROWS * SLAB_COLS),
    )

    out = pl.pallas_call(
        erdos_kernel,
        out_shape=jax.ShapeDtypeStruct((steps, 1, OUT_LANES), jnp.float32),
        grid=(steps,),
        in_specs=[
            pl.BlockSpec((None, M_STEP, F_IN), lambda i: (i, 0, 0)),
            pl.BlockSpec((None, M_STEP, M_STEP), lambda i: (i, 0, 0)),
            pl.BlockSpec((None, M_STEP, M_STEP), lambda i: (i, 0, 0)),
            pl.BlockSpec((None, M_STEP, BATCHES_PER_STEP), lambda i: (i, 0, 0)),
            pl.BlockSpec((SLAB_ROWS, SLAB_COLS), lambda i: (0, 0)),  # weights resident
        ],
        out_specs=pl.BlockSpec((None, 1, OUT_LANES), lambda i: (i, 0, 0)),
        compiler_params=pltpu.CompilerParams(
            dimension_semantics=("parallel",),   # shards steps over TCs on v7x
        ),
        cost_estimate=cost,
    )(x_st, s_st, a_st, bm_st, param_slab)

    probs = out[:, 0, :M_STEP].reshape(b, N_NODES)[..., None]         # (B, N, 1)
    loss = out[:, 0, M_STEP:M_STEP + BATCHES_PER_STEP].reshape(b)     # (B,)
    return probs, loss


def erdos_reference(x, s, a, bm, params):
    """Pure-JAX fp32 reference with the same (PyG-faithful) semantics."""
    def leaky(v):
        return jnp.where(v > 0, v, 0.01 * v)

    def single(xb, sb, ab, bmb):
        h = jnp.dot(sb, jnp.dot(xb, params["w1"])) + params["b1"]
        h = leaky(h)
        g = h
        for l in range(NUM_LAYERS):
            m = jnp.dot(ab, jnp.dot(g, params["wg"][l]))
            i_r = jnp.dot(m, params["wih"][0]) + params["bih"][0]
            i_z = jnp.dot(m, params["wih"][1]) + params["bih"][1]
            i_n = jnp.dot(m, params["wih"][2]) + params["bih"][2]
            h_r = jnp.dot(g, params["whh"][0]) + params["bhh"][0]
            h_z = jnp.dot(g, params["whh"][1]) + params["bhh"][1]
            h_n = jnp.dot(g, params["whh"][2]) + params["bhh"][2]
            r = jax.nn.sigmoid(i_r + h_r)
            z = jax.nn.sigmoid(i_z + h_z)
            n = jnp.tanh(i_n + r * h_n)
            g = (1.0 - z) * n + z * g
        h = leaky(g) + h
        h = leaky(jnp.dot(h, params["wl1"]) + params["bl1"])
        p = jax.nn.sigmoid(jnp.dot(h, params["wl2"]) + params["bl2"])
        deg = jnp.sum(ab, axis=1, keepdims=True)
        mp = jnp.dot(ab, p)
        ew = jnp.dot(bmb, p * mp)
        ed = jnp.dot(bmb, p * deg)
        loss = jnp.mean(-(ed - ew) / 2.0)
        return p, loss

    return jax.vmap(single)(x, s, a, bm)


def build_inputs_and_params():
    key = jax.random.PRNGKey(0)
    k_params, k_data = jax.random.split(key)

    # ---- batch structure: 2 graphs x 8 nodes per graph-batch ----
    nodes_per_graph = N_NODES // N_GRAPHS
    batch_assign = jnp.repeat(jnp.arange(N_GRAPHS), nodes_per_graph)        # (N,)
    same_graph = (batch_assign[:, None] == batch_assign[None, :])
    batch_onehot = (jnp.arange(N_GRAPHS)[:, None]
                    == batch_assign[None, :]).astype(jnp.float32)           # (G, N)

    xs, ss, aas, bms = [], [], [], []
    for kb in jax.random.split(k_data, N_BATCHES):
        ka, kx = jax.random.split(kb)
        rand_a = jax.random.bernoulli(ka, 0.4, (N_NODES, N_NODES))
        adj = jnp.logical_or(rand_a, rand_a.T)                              # symmetric
        adj = jnp.where(jnp.eye(N_NODES, dtype=bool), False, adj)           # no self loops
        adj = jnp.where(same_graph, adj, False).astype(jnp.float32)         # block-diag
        a_hat = adj + jnp.eye(N_NODES, dtype=jnp.float32)
        d_hat = jnp.sum(a_hat, axis=1)
        d_inv = 1.0 / jnp.sqrt(d_hat)
        s_norm = d_inv[:, None] * a_hat * d_inv[None, :]                    # GCN norm
        x = jax.random.normal(kx, (N_NODES, F_IN), dtype=jnp.float32)
        xs.append(x); ss.append(s_norm); aas.append(adj); bms.append(batch_onehot)

    x = jnp.stack(xs)           # (B, N, F_IN)
    s = jnp.stack(ss)           # (B, N, N)
    a = jnp.stack(aas)          # (B, N, N)
    bm = jnp.stack(bms)         # (B, G, N)   (reference only)

    # ---- deterministic parameter init ----
    ks = jax.random.split(k_params, 11)

    def init(k, shape, scale=0.1):
        return scale * jax.random.normal(k, shape, dtype=jnp.float32)

    params = {
        "w1": init(ks[0], (F_IN, HIDDEN)),
        "b1": init(ks[1], (1, HIDDEN)),
        "wg": init(ks[2], (NUM_LAYERS, HIDDEN, HIDDEN)),
        "wih": init(ks[3], (3, HIDDEN, HIDDEN)),   # GRU input weights (r, z, n)
        "whh": init(ks[4], (3, HIDDEN, HIDDEN)),   # GRU hidden weights (r, z, n)
        "bih": init(ks[5], (3, 1, HIDDEN)),
        "bhh": init(ks[6], (3, 1, HIDDEN)),
        "wl1": init(ks[7], (HIDDEN, HIDDEN)),
        "bl1": init(ks[8], (1, HIDDEN)),
        "wl2": init(ks[9], (HIDDEN, 1)),
        "bl2": init(ks[10], (1, 1)),
    }
    return x, s, a, bm, params


if __name__ == "__main__":
    x, s, a, bm, params = build_inputs_and_params()
    slab = pack_params(params)
    probs, loss = erdos_forward(x, s, a, slab)
    jax.block_until_ready((probs, loss))

    assert probs.shape == (N_BATCHES, N_NODES, 1)
    assert loss.shape == (N_BATCHES,)
    assert bool(jnp.all(jnp.isfinite(probs))) and bool(jnp.all(jnp.isfinite(loss)))

    # fp32 pure-JAX reference (bf16 matmul operands / bf16 slab -> loose tol)
    ref_p, ref_l = erdos_reference(x, s, a, bm, params)
    np.testing.assert_allclose(np.asarray(probs), np.asarray(ref_p),
                               atol=5e-2, rtol=5e-2)
    np.testing.assert_allclose(np.asarray(loss), np.asarray(ref_l),
                               atol=5e-2, rtol=5e-2)
    print("KERNEL_OK")
</pallas_src>

<mosaic_0001>
module attributes {stable_mosaic.version = 11 : i64} {
  func.func @erdos_kernel(%arg0: i32, %arg1: memref<1x32x4xf32, #tpu.memory_space<vmem>>, %arg2: memref<1x32x32xf32, #tpu.memory_space<vmem>>, %arg3: memref<1x32x32xf32, #tpu.memory_space<vmem>>, %arg4: memref<1x32x2xf32, #tpu.memory_space<vmem>>, %arg5: memref<176x256xbf16, #tpu.memory_space<vmem>>, %arg6: memref<1x1x128xf32, #tpu.memory_space<vmem>>) attributes {dimension_semantics = [#tpu.dimension_semantics<parallel>], iteration_bounds = array<i64: 2>, scalar_prefetch = 0 : i64, scratch_operands = 0 : i64, tpu.core_type = #tpu.core_type<tc>, window_params = [{transform_indices = @transform_0, window_bounds = array<i64: 1, 32, 4>}, {transform_indices = @transform_1, window_bounds = array<i64: 1, 32, 32>}, {transform_indices = @transform_2, window_bounds = array<i64: 1, 32, 32>}, {transform_indices = @transform_3, window_bounds = array<i64: 1, 32, 2>}, {pipeline_mode = #tpu.pipeline_mode<synchronous>, transform_indices = @transform_4, window_bounds = array<i64: 176, 256>}, {transform_indices = @transform_5, window_bounds = array<i64: 1, 1, 128>}]} {
    %c0 = arith.constant 0 : index
    %c0_0 = arith.constant 0 : index
    %c0_1 = arith.constant 0 : index
    %0 = vector.load %arg1[%c0, %c0_0, %c0_1] : memref<1x32x4xf32, #tpu.memory_space<vmem>>, vector<1x32x4xf32>
    %1 = vector.shape_cast %0 : vector<1x32x4xf32> to vector<32x4xf32>
    %c0_2 = arith.constant 0 : index
    %c0_3 = arith.constant 0 : index
    %c0_4 = arith.constant 0 : index
    %2 = vector.load %arg2[%c0_2, %c0_3, %c0_4] : memref<1x32x32xf32, #tpu.memory_space<vmem>>, vector<1x32x32xf32>
    %3 = vector.shape_cast %2 : vector<1x32x32xf32> to vector<32x32xf32>
    %c0_5 = arith.constant 0 : index
    %c0_6 = arith.constant 0 : index
    %c0_7 = arith.constant 0 : index
    %4 = vector.load %arg3[%c0_5, %c0_6, %c0_7] : memref<1x32x32xf32, #tpu.memory_space<vmem>>, vector<1x32x32xf32>
    %5 = vector.shape_cast %4 : vector<1x32x32xf32> to vector<32x32xf32>
    %c0_8 = arith.constant 0 : index
    %c0_9 = arith.constant 0 : index
    %c0_10 = arith.constant 0 : index
    %6 = vector.load %arg4[%c0_8, %c0_9, %c0_10] : memref<1x32x2xf32, #tpu.memory_space<vmem>>, vector<1x32x2xf32>
    %7 = vector.shape_cast %6 : vector<1x32x2xf32> to vector<32x2xf32>
    %8 = arith.truncf %3 : vector<32x32xf32> to vector<32x32xbf16>
    %9 = arith.truncf %5 : vector<32x32xf32> to vector<32x32xbf16>
    %c0_11 = arith.constant 0 : index
    %c0_12 = arith.constant 0 : index
    %10 = vector.load %arg5[%c0_11, %c0_12] : memref<176x256xbf16, #tpu.memory_space<vmem>>, vector<4x32xbf16>
    %c8 = arith.constant 8 : index
    %c0_13 = arith.constant 0 : index
    %11 = vector.load %arg5[%c8, %c0_13] : memref<176x256xbf16, #tpu.memory_space<vmem>>, vector<1x32xbf16>
    %12 = arith.extf %11 : vector<1x32xbf16> to vector<1x32xf32>
    %c112 = arith.constant 112 : index
    %c0_14 = arith.constant 0 : index
    %13 = vector.load %arg5[%c112, %c0_14] : memref<176x256xbf16, #tpu.memory_space<vmem>>, vector<1x96xbf16>
    %14 = arith.extf %13 : vector<1x96xbf16> to vector<1x96xf32>
    %c112_15 = arith.constant 112 : index
    %c128 = arith.constant 128 : index
    %15 = vector.load %arg5[%c112_15, %c128] : memref<176x256xbf16, #tpu.memory_space<vmem>>, vector<1x96xbf16>
    %16 = arith.extf %15 : vector<1x96xbf16> to vector<1x96xf32>
    %c120 = arith.constant 120 : index
    %c0_16 = arith.constant 0 : index
    %17 = vector.load %arg5[%c120, %c0_16] : memref<176x256xbf16, #tpu.memory_space<vmem>>, vector<32x32xbf16>
    %c152 = arith.constant 152 : index
    %c0_17 = arith.constant 0 : index
    %18 = vector.load %arg5[%c152, %c0_17] : memref<176x256xbf16, #tpu.memory_space<vmem>>, vector<1x32xbf16>
    %19 = arith.extf %18 : vector<1x32xbf16> to vector<1x32xf32>
    %c160 = arith.constant 160 : index
    %c0_18 = arith.constant 0 : index
    %20 = vector.load %arg5[%c160, %c0_18] : memref<176x256xbf16, #tpu.memory_space<vmem>>, vector<1x32xbf16>
    %c160_19 = arith.constant 160 : index
    %c32 = arith.constant 32 : index
    %21 = vector.load %arg5[%c160_19, %c32] : memref<176x256xbf16, #tpu.memory_space<vmem>>, vector<1x1xbf16>
    %22 = arith.extf %21 : vector<1x1xbf16> to vector<1x1xf32>
    %23 = arith.truncf %1 : vector<32x4xf32> to vector<32x4xbf16>
    %cst = arith.constant dense<0.000000e+00> : vector<32x32xf32>
    %24 = tpu.matmul %23, %10, %cst {dimension_numbers = #tpu.dot_dimension_numbers<[1], [0], [0], [1], [0, 0, 1, 1], [], []>} : vector<32x4xbf16>, vector<4x32xbf16>, vector<32x32xf32> -> vector<32x32xf32>
    %25 = arith.truncf %24 : vector<32x32xf32> to vector<32x32xbf16>
    %cst_20 = arith.constant dense<0.000000e+00> : vector<32x32xf32>
    %26 = tpu.matmul %8, %25, %cst_20 {dimension_numbers = #tpu.dot_dimension_numbers<[1], [0], [0], [1], [0, 0, 1, 1], [], []>} : vector<32x32xbf16>, vector<32x32xbf16>, vector<32x32xf32> -> vector<32x32xf32>
    %27 = vector.broadcast %12 : vector<1x32xf32> to vector<32x32xf32>
    %28 = arith.addf %26, %27 : vector<32x32xf32>
    %cst_21 = arith.constant 0.000000e+00 : f32
    %29 = vector.broadcast %cst_21 : f32 to vector<32x32xf32>
    %30 = arith.cmpf ogt, %28, %29 : vector<32x32xf32>
    %cst_22 = arith.constant 0.00999999977 : f32
    %31 = vector.broadcast %cst_22 : f32 to vector<32x32xf32>
    %32 = arith.mulf %31, %28 : vector<32x32xf32>
    %33 = arith.select %30, %28, %32 : vector<32x32xi1>, vector<32x32xf32>
    %c16 = arith.constant 16 : index
    %c0_23 = arith.constant 0 : index
    %34 = vector.load %arg5[%c16, %c0_23] : memref<176x256xbf16, #tpu.memory_space<vmem>>, vector<32x256xbf16>
    %35 = arith.truncf %33 : vector<32x32xf32> to vector<32x32xbf16>
    %cst_24 = arith.constant dense<0.000000e+00> : vector<32x256xf32>
    %36 = tpu.matmul %35, %34, %cst_24 {dimension_numbers = #tpu.dot_dimension_numbers<[1], [0], [0], [1], [0, 0, 1, 1], [], []>} : vector<32x32xbf16>, vector<32x256xbf16>, vector<32x256xf32> -> vector<32x256xf32>
    %37 = vector.extract_strided_slice %36 {offsets = [0, 0], sizes = [32, 96], strides = [1, 1]} : vector<32x256xf32> to vector<32x96xf32>
    %38 = arith.truncf %37 : vector<32x96xf32> to vector<32x96xbf16>
    %cst_25 = arith.constant dense<0.000000e+00> : vector<32x96xf32>
    %39 = tpu.matmul %9, %38, %cst_25 {dimension_numbers = #tpu.dot_dimension_numbers<[1], [0], [0], [1], [0, 0, 1, 1], [], []>} : vector<32x32xbf16>, vector<32x96xbf16>, vector<32x96xf32> -> vector<32x96xf32>
    %40 = vector.broadcast %14 : vector<1x96xf32> to vector<32x96xf32>
    %41 = arith.addf %39, %40 : vector<32x96xf32>
    %42 = vector.extract_strided_slice %36 {offsets = [0, 128], sizes = [32, 96], strides = [1, 1]} : vector<32x256xf32> to vector<32x96xf32>
    %43 = vector.broadcast %16 : vector<1x96xf32> to vector<32x96xf32>
    %44 = arith.addf %42, %43 : vector<32x96xf32>
    %45 = vector.extract_strided_slice %41 {offsets = [0, 0], sizes = [32, 32], strides = [1, 1]} : vector<32x96xf32> to vector<32x32xf32>
    %46 = vector.extract_strided_slice %44 {offsets = [0, 0], sizes = [32, 32], strides = [1, 1]} : vector<32x96xf32> to vector<32x32xf32>
    %47 = arith.addf %45, %46 : vector<32x32xf32>
    %48 = arith.negf %47 : vector<32x32xf32>
    %49 = math.exp %48 : vector<32x32xf32>
    %cst_26 = arith.constant 1.000000e+00 : f32
    %50 = vector.broadcast %cst_26 : f32 to vector<32x32xf32>
    %51 = arith.addf %50, %49 : vector<32x32xf32>
    %52 = arith.divf %50, %51 : vector<32x32xf32>
    %53 = vector.extract_strided_slice %41 {offsets = [0, 32], sizes = [32, 32], strides = [1, 1]} : vector<32x96xf32> to vector<32x32xf32>
    %54 = vector.extract_strided_slice %44 {offsets = [0, 32], sizes = [32, 32], strides = [1, 1]} : vector<32x96xf32> to vector<32x32xf32>
    %55 = arith.addf %53, %54 : vector<32x32xf32>
    %56 = arith.negf %55 : vector<32x32xf32>
    %57 = math.exp %56 : vector<32x32xf32>
    %cst_27 = arith.constant 1.000000e+00 : f32
    %58 = vector.broadcast %cst_27 : f32 to vector<32x32xf32>
    %59 = arith.addf %58, %57 : vector<32x32xf32>
    %60 = arith.divf %58, %59 : vector<32x32xf32>
    %61 = vector.extract_strided_slice %41 {offsets = [0, 64], sizes = [32, 32], strides = [1, 1]} : vector<32x96xf32> to vector<32x32xf32>
    %62 = vector.extract_strided_slice %44 {offsets = [0, 64], sizes = [32, 32], strides = [1, 1]} : vector<32x96xf32> to vector<32x32xf32>
    %63 = arith.mulf %52, %62 : vector<32x32xf32>
    %64 = arith.addf %61, %63 : vector<32x32xf32>
    %65 = math.tanh %64 : vector<32x32xf32>
    %cst_28 = arith.constant 1.000000e+00 : f32
    %66 = vector.broadcast %cst_28 : f32 to vector<32x32xf32>
    %67 = arith.subf %66, %60 : vector<32x32xf32>
    %68 = arith.mulf %67, %65 : vector<32x32xf32>
    %69 = arith.mulf %60, %33 : vector<32x32xf32>
    %70 = arith.addf %68, %69 : vector<32x32xf32>
    %c48 = arith.constant 48 : index
    %c0_29 = arith.constant 0 : index
    %71 = vector.load %arg5[%c48, %c0_29] : memref<176x256xbf16, #tpu.memory_space<vmem>>, vector<32x256xbf16>
    %72 = arith.truncf %70 : vector<32x32xf32> to vector<32x32xbf16>
    %cst_30 = arith.constant dense<0.000000e+00> : vector<32x256xf32>
    %73 = tpu.matmul %72, %71, %cst_30 {dimension_numbers = #tpu.dot_dimension_numbers<[1], [0], [0], [1], [0, 0, 1, 1], [], []>} : vector<32x32xbf16>, vector<32x256xbf16>, vector<32x256xf32> -> vector<32x256xf32>
    %74 = vector.extract_strided_slice %73 {offsets = [0, 0], sizes = [32, 96], strides = [1, 1]} : vector<32x256xf32> to vector<32x96xf32>
    %75 = arith.truncf %74 : vector<32x96xf32> to vector<32x96xbf16>
    %cst_31 = arith.constant dense<0.000000e+00> : vector<32x96xf32>
    %76 = tpu.matmul %9, %75, %cst_31 {dimension_numbers = #tpu.dot_dimension_numbers<[1], [0], [0], [1], [0, 0, 1, 1], [], []>} : vector<32x32xbf16>, vector<32x96xbf16>, vector<32x96xf32> -> vector<32x96xf32>
    %77 = vector.broadcast %14 : vector<1x96xf32> to vector<32x96xf32>
    %78 = arith.addf %76, %77 : vector<32x96xf32>
    %79 = vector.extract_strided_slice %73 {offsets = [0, 128], sizes = [32, 96], strides = [1, 1]} : vector<32x256xf32> to vector<32x96xf32>
    %80 = vector.broadcast %16 : vector<1x96xf32> to vector<32x96xf32>
    %81 = arith.addf %79, %80 : vector<32x96xf32>
    %82 = vector.extract_strided_slice %78 {offsets = [0, 0], sizes = [32, 32], strides = [1, 1]} : vector<32x96xf32> to vector<32x32xf32>
    %83 = vector.extract_strided_slice %81 {offsets = [0, 0], sizes = [32, 32], strides = [1, 1]} : vector<32x96xf32> to vector<32x32xf32>
    %84 = arith.addf %82, %83 : vector<32x32xf32>
    %85 = arith.negf %84 : vector<32x32xf32>
    %86 = math.exp %85 : vector<32x32xf32>
    %cst_32 = arith.constant 1.000000e+00 : f32
    %87 = vector.broadcast %cst_32 : f32 to vector<32x32xf32>
    %88 = arith.addf %87, %86 : vector<32x32xf32>
    %89 = arith.divf %87, %88 : vector<32x32xf32>
    %90 = vector.extract_strided_slice %78 {offsets = [0, 32], sizes = [32, 32], strides = [1, 1]} : vector<32x96xf32> to vector<32x32xf32>
    %91 = vector.extract_strided_slice %81 {offsets = [0, 32], sizes = [32, 32], strides = [1, 1]} : vector<32x96xf32> to vector<32x32xf32>
    %92 = arith.addf %90, %91 : vector<32x32xf32>
    %93 = arith.negf %92 : vector<32x32xf32>
    %94 = math.exp %93 : vector<32x32xf32>
    %cst_33 = arith.constant 1.000000e+00 : f32
    %95 = vector.broadcast %cst_33 : f32 to vector<32x32xf32>
    %96 = arith.addf %95, %94 : vector<32x32xf32>
    %97 = arith.divf %95, %96 : vector<32x32xf32>
    %98 = vector.extract_strided_slice %78 {offsets = [0, 64], sizes = [32, 32], strides = [1, 1]} : vector<32x96xf32> to vector<32x32xf32>
    %99 = vector.extract_strided_slice %81 {offsets = [0, 64], sizes = [32, 32], strides = [1, 1]} : vector<32x96xf32> to vector<32x32xf32>
    %100 = arith.mulf %89, %99 : vector<32x32xf32>
    %101 = arith.addf %98, %100 : vector<32x32xf32>
    %102 = math.tanh %101 : vector<32x32xf32>
    %cst_34 = arith.constant 1.000000e+00 : f32
    %103 = vector.broadcast %cst_34 : f32 to vector<32x32xf32>
    %104 = arith.subf %103, %97 : vector<32x32xf32>
    %105 = arith.mulf %104, %102 : vector<32x32xf32>
    %106 = arith.mulf %97, %70 : vector<32x32xf32>
    %107 = arith.addf %105, %106 : vector<32x32xf32>
    %c80 = arith.constant 80 : index
    %c0_35 = arith.constant 0 : index
    %108 = vector.load %arg5[%c80, %c0_35] : memref<176x256xbf16, #tpu.memory_space<vmem>>, vector<32x256xbf16>
    %109 = arith.truncf %107 : vector<32x32xf32> to vector<32x32xbf16>
    %cst_36 = arith.constant dense<0.000000e+00> : vector<32x256xf32>
    %110 = tpu.matmul %109, %108, %cst_36 {dimension_numbers = #tpu.dot_dimension_numbers<[1], [0], [0], [1], [0, 0, 1, 1], [], []>} : vector<32x32xbf16>, vector<32x256xbf16>, vector<32x256xf32> -> vector<32x256xf32>
    %111 = vector.extract_strided_slice %110 {offsets = [0, 0], sizes = [32, 96], strides = [1, 1]} : vector<32x256xf32> to vector<32x96xf32>
    %112 = arith.truncf %111 : vector<32x96xf32> to vector<32x96xbf16>
    %cst_37 = arith.constant dense<0.000000e+00> : vector<32x96xf32>
    %113 = tpu.matmul %9, %112, %cst_37 {dimension_numbers = #tpu.dot_dimension_numbers<[1], [0], [0], [1], [0, 0, 1, 1], [], []>} : vector<32x32xbf16>, vector<32x96xbf16>, vector<32x96xf32> -> vector<32x96xf32>
    %114 = vector.broadcast %14 : vector<1x96xf32> to vector<32x96xf32>
    %115 = arith.addf %113, %114 : vector<32x96xf32>
    %116 = vector.extract_strided_slice %110 {offsets = [0, 128], sizes = [32, 96], strides = [1, 1]} : vector<32x256xf32> to vector<32x96xf32>
    %117 = vector.broadcast %16 : vector<1x96xf32> to vector<32x96xf32>
    %118 = arith.addf %116, %117 : vector<32x96xf32>
    %119 = vector.extract_strided_slice %115 {offsets = [0, 0], sizes = [32, 32], strides = [1, 1]} : vector<32x96xf32> to vector<32x32xf32>
    %120 = vector.extract_strided_slice %118 {offsets = [0, 0], sizes = [32, 32], strides = [1, 1]} : vector<32x96xf32> to vector<32x32xf32>
    %121 = arith.addf %119, %120 : vector<32x32xf32>
    %122 = arith.negf %121 : vector<32x32xf32>
    %123 = math.exp %122 : vector<32x32xf32>
    %cst_38 = arith.constant 1.000000e+00 : f32
    %124 = vector.broadcast %cst_38 : f32 to vector<32x32xf32>
    %125 = arith.addf %124, %123 : vector<32x32xf32>
    %126 = arith.divf %124, %125 : vector<32x32xf32>
    %127 = vector.extract_strided_slice %115 {offsets = [0, 32], sizes = [32, 32], strides = [1, 1]} : vector<32x96xf32> to vector<32x32xf32>
    %128 = vector.extract_strided_slice %118 {offsets = [0, 32], sizes = [32, 32], strides = [1, 1]} : vector<32x96xf32> to vector<32x32xf32>
    %129 = arith.addf %127, %128 : vector<32x32xf32>
    %130 = arith.negf %129 : vector<32x32xf32>
    %131 = math.exp %130 : vector<32x32xf32>
    %cst_39 = arith.constant 1.000000e+00 : f32
    %132 = vector.broadcast %cst_39 : f32 to vector<32x32xf32>
    %133 = arith.addf %132, %131 : vector<32x32xf32>
    %134 = arith.divf %132, %133 : vector<32x32xf32>
    %135 = vector.extract_strided_slice %115 {offsets = [0, 64], sizes = [32, 32], strides = [1, 1]} : vector<32x96xf32> to vector<32x32xf32>
    %136 = vector.extract_strided_slice %118 {offsets = [0, 64], sizes = [32, 32], strides = [1, 1]} : vector<32x96xf32> to vector<32x32xf32>
    %137 = arith.mulf %126, %136 : vector<32x32xf32>
    %138 = arith.addf %135, %137 : vector<32x32xf32>
    %139 = math.tanh %138 : vector<32x32xf32>
    %cst_40 = arith.constant 1.000000e+00 : f32
    %140 = vector.broadcast %cst_40 : f32 to vector<32x32xf32>
    %141 = arith.subf %140, %134 : vector<32x32xf32>
    %142 = arith.mulf %141, %139 : vector<32x32xf32>
    %143 = arith.mulf %134, %107 : vector<32x32xf32>
    %144 = arith.addf %142, %143 : vector<32x32xf32>
    %cst_41 = arith.constant 0.000000e+00 : f32
    %145 = vector.broadcast %cst_41 : f32 to vector<32x32xf32>
    %146 = arith.cmpf ogt, %144, %145 : vector<32x32xf32>
    %cst_42 = arith.constant 0.00999999977 : f32
    %147 = vector.broadcast %cst_42 : f32 to vector<32x32xf32>
    %148 = arith.mulf %147, %144 : vector<32x32xf32>
    %149 = arith.select %146, %144, %148 : vector<32x32xi1>, vector<32x32xf32>
    %150 = arith.addf %149, %33 : vector<32x32xf32>
    %151 = arith.truncf %150 : vector<32x32xf32> to vector<32x32xbf16>
    %cst_43 = arith.constant dense<0.000000e+00> : vector<32x32xf32>
    %152 = tpu.matmul %151, %17, %cst_43 {dimension_numbers = #tpu.dot_dimension_numbers<[1], [0], [0], [1], [0, 0, 1, 1], [], []>} : vector<32x32xbf16>, vector<32x32xbf16>, vector<32x32xf32> -> vector<32x32xf32>
    %153 = vector.broadcast %19 : vector<1x32xf32> to vector<32x32xf32>
    %154 = arith.addf %152, %153 : vector<32x32xf32>
    %cst_44 = arith.constant 0.000000e+00 : f32
    %155 = vector.broadcast %cst_44 : f32 to vector<32x32xf32>
    %156 = arith.cmpf ogt, %154, %155 : vector<32x32xf32>
    %cst_45 = arith.constant 0.00999999977 : f32
    %157 = vector.broadcast %cst_45 : f32 to vector<32x32xf32>
    %158 = arith.mulf %157, %154 : vector<32x32xf32>
    %159 = arith.select %156, %154, %158 : vector<32x32xi1>, vector<32x32xf32>
    %160 = arith.truncf %159 : vector<32x32xf32> to vector<32x32xbf16>
    %cst_46 = arith.constant dense<0.000000e+00> : vector<1x32xf32>
    %161 = tpu.matmul %20, %160, %cst_46 {dimension_numbers = #tpu.dot_dimension_numbers<[1], [1], [0], [0], [0, 0, 1, 0], [], []>} : vector<1x32xbf16>, vector<32x32xbf16>, vector<1x32xf32> -> vector<1x32xf32>
    %162 = vector.broadcast %22 : vector<1x1xf32> to vector<1x32xf32>
    %163 = arith.addf %161, %162 : vector<1x32xf32>
    %164 = arith.negf %163 : vector<1x32xf32>
    %165 = math.exp %164 : vector<1x32xf32>
    %cst_47 = arith.constant 1.000000e+00 : f32
    %166 = vector.broadcast %cst_47 : f32 to vector<1x32xf32>
    %167 = arith.addf %166, %165 : vector<1x32xf32>
    %168 = arith.divf %166, %167 : vector<1x32xf32>
    %cst_48 = arith.constant dense<0.000000e+00> : vector<32xf32>
    %169 = vector.multi_reduction <add>, %5, %cst_48 [0] : vector<32x32xf32> to vector<32xf32>
    %170 = vector.shape_cast %169 : vector<32xf32> to vector<1x32xf32>
    %cst_49 = arith.constant dense<0.000000e+00> : vector<1x32xf32>
    %171 = tpu.matmul %168, %5, %cst_49 {dimension_numbers = #tpu.dot_dimension_numbers<[1], [0], [0], [1], [0, 0, 1, 1], [], []>} : vector<1x32xf32>, vector<32x32xf32>, vector<1x32xf32> -> vector<1x32xf32>
    %172 = arith.subf %170, %171 : vector<1x32xf32>
    %173 = arith.mulf %168, %172 : vector<1x32xf32>
    %cst_50 = arith.constant dense<0.000000e+00> : vector<1x2xf32>
    %174 = tpu.matmul %173, %7, %cst_50 {dimension_numbers = #tpu.dot_dimension_numbers<[1], [0], [0], [1], [0, 0, 1, 1], [], []>} : vector<1x32xf32>, vector<32x2xf32>, vector<1x2xf32> -> vector<1x2xf32>
    %cst_51 = arith.constant -2.500000e-01 : f32
    %175 = vector.broadcast %cst_51 : f32 to vector<1x2xf32>
    %176 = arith.mulf %174, %175 : vector<1x2xf32>
    %cst_52 = arith.constant 0.000000e+00 : f32
    %177 = vector.broadcast %cst_52 : f32 to vector<1x94xf32>
    %178 = tpu.concatenate %168, %176, %177 in 1 : vector<1x32xf32>, vector<1x2xf32>, vector<1x94xf32> -> vector<1x128xf32>
    %c0_53 = arith.constant 0 : index
    %c0_54 = arith.constant 0 : index
    %c0_55 = arith.constant 0 : index
    %179 = vector.load %arg6[%c0_53, %c0_54, %c0_55] : memref<1x1x128xf32, #tpu.memory_space<vmem>>, vector<1x1x128xf32>
    %180 = vector.shape_cast %179 : vector<1x1x128xf32> to vector<1x128xf32>
    %181 = vector.shape_cast %178 : vector<1x128xf32> to vector<1x1x128xf32>
    tpu.vector_store %arg6[%c0_53, %c0_54, %c0_55], %181 {strides = array<i32>} : memref<1x1x128xf32, #tpu.memory_space<vmem>>, vector<1x1x128xf32>,
    return
  }
  func.func @transform_0(%arg0: i32) -> (i32, i32, i32) {
    %c0_i32 = arith.constant 0 : i32
    %c0_i32_0 = arith.constant 0 : i32
    %c0_i32_1 = arith.constant 0 : i32
    return %arg0, %c0_i32, %c0_i32_0 : i32, i32, i32
  }
  func.func @transform_1(%arg0: i32) -> (i32, i32, i32) {
    %c0_i32 = arith.constant 0 : i32
    %c0_i32_0 = arith.constant 0 : i32
    %c0_i32_1 = arith.constant 0 : i32
    return %arg0, %c0_i32, %c0_i32_0 : i32, i32, i32
  }
  func.func @transform_2(%arg0: i32) -> (i32, i32, i32) {
    %c0_i32 = arith.constant 0 : i32
    %c0_i32_0 = arith.constant 0 : i32
    %c0_i32_1 = arith.constant 0 : i32
    return %arg0, %c0_i32, %c0_i32_0 : i32, i32, i32
  }
  func.func @transform_3(%arg0: i32) -> (i32, i32, i32) {
    %c0_i32 = arith.constant 0 : i32
    %c0_i32_0 = arith.constant 0 : i32
    %c0_i32_1 = arith.constant 0 : i32
    return %arg0, %c0_i32, %c0_i32_0 : i32, i32, i32
  }
  func.func @transform_4(%arg0: i32) -> (i32, i32) {
    %c0_i32 = arith.constant 0 : i32
    %c0_i32_0 = arith.constant 0 : i32
    %c0_i32_1 = arith.constant 0 : i32
    return %c0_i32, %c0_i32_0 : i32, i32
  }
  func.func @transform_5(%arg0: i32) -> (i32, i32, i32) {
    %c0_i32 = arith.constant 0 : i32
    %c0_i32_0 = arith.constant 0 : i32
    %c0_i32_1 = arith.constant 0 : i32
    return %arg0, %c0_i32, %c0_i32_0 : i32, i32, i32
  }
}

</mosaic_0001>

<llo_original>
// kernel: tpu_custom_call.1
$region0: #{tpu_custom_call.1}
  #allocation0 [shape = 'u32[]', space=smem, size = 0x4, offset = 0x4, fixed_abs, tag = 'smem constant byte address 0x4 - core index']
  #allocation1 [shape = 'u32[72,128]{1,0:T(1,128)}', space=vmem, size = 0x9000, scoped, tag = 'internal scratch']
  %s0 = inlined_call_operand.vmem [shape: f32[2,32,4], index: 0, kind: input, shape index: {}]
  %s1 = inlined_call_operand.vmem [shape: f32[2,32,32], index: 1, kind: input, shape index: {}]
  %s2 = inlined_call_operand.vmem [shape: f32[2,32,32], index: 2, kind: input, shape index: {}]
  %s3 = inlined_call_operand.vmem [shape: f32[2,32,2], index: 3, kind: input, shape index: {}]
  %s4 = inlined_call_operand.hbm [shape: bf16[176,256], index: 4, kind: input, shape index: {}]
  %s5 = inlined_call_operand.hbm [shape: f32[2,1,128], index: 5, kind: output, shape index: {}]
  %s6 = sld [smem:[#allocation0]]
  $region57: #{tpu_custom_call.1} parent=0
    _
  %s8 = ssub.s32 1, %s6
  %s9 = scalar_select 0, %s8, %s6
  $region1: #{tpu_custom_call.1} parent=0
    #allocation2 [shape = 'u8[90112]{0}', space=vmem, size = 0x16000, scoped, tag = 'input window, operand 4, single buffered']
    #allocation3 [shape = 's32[2]{0}', space=sflag, size = 0x8, scoped, tag = 'scoped memory for tpu_custom_call.1']
    #allocation4 [shape = 's32[2]{0}', space=sflag, size = 0x8, scoped, tag = 'scoped memory for tpu_custom_call.1']
    #allocation5 [shape = 'u8[1024]{0}', space=vmem, size = 0x400, scoped, tag = 'output window, operand 0']
    %10 = vsyncpa [#allocation3], 0
    %11 = vsyncpa [#allocation4], 0
    %s12 = scalar_lea.sflag [#allocation4], 1
    %13 = vsyncpa %s12, 0
    loop: start=0, step=1, limit=4
    $region2: #{tpu_custom_call.1} parent=1 // loop_pre_header
      _
    $region3: #{tpu_custom_call.1} parent=1 // loop_header
      %s15 = sphi 0, %s19
      %p16 = scmp.ge.s32.totalorder %s15, 4
      %s25 = sphi 0, %s27
      %s28 = sphi 0, %s25
      %s29 = sphi 0, %s28
      %s45 = sphi 0, %s29
      %s51 = sphi 0, %s53
      %s54 = sphi 0, %s51
      %s55 = sphi 0, %s54
      %s71 = sphi 0, %s55
      %s77 = sphi 0, %s79
      %s80 = sphi 0, %s77
      %s81 = sphi 0, %s80
      %s97 = sphi 0, %s81
      %s103 = sphi 0, %s105
      %s106 = sphi 0, %s103
      %s107 = sphi 0, %s106
      %s123 = sphi 0, %s107
      %s127 = sphi 0, %s127
      %s129 = sphi 0, %s127
      %s130 = sphi 0, %s129
      %s144 = sphi 0, %s130
      %s150 = sphi 0, %s152
      %s153 = sphi 0, %s150
      %s154 = sphi 0, %s153
      %s170 = sphi 0, %s154
    $region4: #{tpu_custom_call.1} parent=1 // loop_header_branch
      %18 = sbr.rel (%p16) target = $region8
    $region5: #{tpu_custom_call.1} parent=1 // loop_body
      %s20 = ssub.s32 %s15, 1
      %s21 = ssub.s32 %s15, 2
      %s22 = sadd.s32 %s15, 1
      %s23 = ssub.s32 %s15, %s22
      %p24 = scmp.eq.s32.totalorder %s23, 0
      %s26 = sadd.s32 %s25, 1
      %s27 = scalar_select %p24, %s25, %s26
      %p30 = pneg %p24
      %p31 = scmp.eq.s32.totalorder %s15, 1
      %p32 = por %p30, %p31
      %p33 = scmp.ne.s32.totalorder %s25, %s28
      %p34 = scmp.eq.s32.totalorder %s15, 0
      %p35 = por %p33, %p34
      %p36 = scmp.ne.s32.totalorder %s25, %s28
      %p37 = scmp.eq.s32.totalorder %s20, 1
      %p38 = por %p36, %p37
      %p39 = scmp.ne.s32.totalorder %s28, %s29
      %p40 = scmp.eq.s32.totalorder %s20, 0
      %p41 = por %p39, %p40
      %p42 = scmp.ne.s32.totalorder %s28, %s29
      %p43 = scmp.eq.s32.totalorder %s21, 1
      %p44 = por %p42, %p43
      %p46 = scmp.ne.s32.totalorder %s29, %s45
      %p47 = scmp.eq.s32.totalorder %s21, 0
      %p48 = por %p46, %p47
      %s49 = ssub.s32 %s15, %s22
      %p50 = scmp.eq.s32.totalorder %s49, 0
      %s52 = sadd.s32 %s51, 1
      %s53 = scalar_select %p50, %s51, %s52
      %p56 = pneg %p50
      %p57 = scmp.eq.s32.totalorder %s15, 1
      %p58 = por %p56, %p57
      %p59 = scmp.ne.s32.totalorder %s51, %s54
      %p60 = scmp.eq.s32.totalorder %s15, 0
      %p61 = por %p59, %p60
      %p62 = scmp.ne.s32.totalorder %s51, %s54
      %p63 = scmp.eq.s32.totalorder %s20, 1
      %p64 = por %p62, %p63
      %p65 = scmp.ne.s32.totalorder %s54, %s55
      %p66 = scmp.eq.s32.totalorder %s20, 0
      %p67 = por %p65, %p66
      %p68 = scmp.ne.s32.totalorder %s54, %s55
      %p69 = scmp.eq.s32.totalorder %s21, 1
      %p70 = por %p68, %p69
      %p72 = scmp.ne.s32.totalorder %s55, %s71
      %p73 = scmp.eq.s32.totalorder %s21, 0
      %p74 = por %p72, %p73
      %s75 = ssub.s32 %s15, %s22
      %p76 = scmp.eq.s32.totalorder %s75, 0
      %s78 = sadd.s32 %s77, 1
      %s79 = scalar_select %p76, %s77, %s78
      %p82 = pneg %p76
      %p83 = scmp.eq.s32.totalorder %s15, 1
      %p84 = por %p82, %p83
      %p85 = scmp.ne.s32.totalorder %s77, %s80
      %p86 = scmp.eq.s32.totalorder %s15, 0
      %p87 = por %p85, %p86
      %p88 = scmp.ne.s32.totalorder %s77, %s80
      %p89 = scmp.eq.s32.totalorder %s20, 1
      %p90 = por %p88, %p89
      %p91 = scmp.ne.s32.totalorder %s80, %s81
      %p92 = scmp.eq.s32.totalorder %s20, 0
      %p93 = por %p91, %p92
      %p94 = scmp.ne.s32.totalorder %s80, %s81
      %p95 = scmp.eq.s32.totalorder %s21, 1
      %p96 = por %p94, %p95
      %p98 = scmp.ne.s32.totalorder %s81, %s97
      %p99 = scmp.eq.s32.totalorder %s21, 0
      %p100 = por %p98, %p99
      %s101 = ssub.s32 %s15, %s22
      %p102 = scmp.eq.s32.totalorder %s101, 0
      %s104 = sadd.s32 %s103, 1
      %s105 = scalar_select %p102, %s103, %s104
      %p108 = pneg %p102
      %p109 = scmp.eq.s32.totalorder %s15, 1
      %p110 = por %p108, %p109
      %p111 = scmp.ne.s32.totalorder %s103, %s106
      %p112 = scmp.eq.s32.totalorder %s15, 0
      %p113 = por %p111, %p112
      %p114 = scmp.ne.s32.totalorder %s103, %s106
      %p115 = scmp.eq.s32.totalorder %s20, 1
      %p116 = por %p114, %p115
      %p117 = scmp.ne.s32.totalorder %s106, %s107
      %p118 = scmp.eq.s32.totalorder %s20, 0
      %p119 = por %p117, %p118
      %p120 = scmp.ne.s32.totalorder %s106, %s107
      %p121 = scmp.eq.s32.totalorder %s21, 1
      %p122 = por %p120, %p121
      %p124 = scmp.ne.s32.totalorder %s107, %s123
      %p125 = scmp.eq.s32.totalorder %s21, 0
      %p126 = por %p124, %p125
      %s128 = sadd.s32 %s127, 1
      %p131 = scmp.eq.s32.totalorder %s15, 1
      %p132 = scmp.ne.s32.totalorder %s127, %s129
      %p133 = scmp.eq.s32.totalorder %s15, 0
      %p134 = por %p132, %p133
      %p135 = scmp.ne.s32.totalorder %s127, %s129
      %p136 = scmp.eq.s32.totalorder %s20, 1
      %p137 = por %p135, %p136
      %p138 = scmp.ne.s32.totalorder %s129, %s130
      %p139 = scmp.eq.s32.totalorder %s20, 0
      %p140 = por %p138, %p139
      %p141 = scmp.ne.s32.totalorder %s129, %s130
      %p142 = scmp.eq.s32.totalorder %s21, 1
      %p143 = por %p141, %p142
      %p145 = scmp.ne.s32.totalorder %s130, %s144
      %p146 = scmp.eq.s32.totalorder %s21, 0
      %p147 = por %p145, %p146
      %s148 = ssub.s32 %s15, %s22
      %p149 = scmp.eq.s32.totalorder %s148, 0
      %s151 = sadd.s32 %s150, 1
      %s152 = scalar_select %p149, %s150, %s151
      %p155 = pneg %p149
      %p156 = scmp.eq.s32.totalorder %s15, 1
      %p157 = por %p155, %p156
      %p158 = scmp.ne.s32.totalorder %s150, %s153
      %p159 = scmp.eq.s32.totalorder %s15, 0
      %p160 = por %p158, %p159
      %p161 = scmp.ne.s32.totalorder %s150, %s153
      %p162 = scmp.eq.s32.totalorder %s20, 1
      %p163 = por %p161, %p162
      %p164 = scmp.ne.s32.totalorder %s153, %s154
      %p165 = scmp.eq.s32.totalorder %s20, 0
      %p166 = por %p164, %p165
      %p167 = scmp.ne.s32.totalorder %s153, %s154
      %p168 = scmp.eq.s32.totalorder %s21, 1
      %p169 = por %p167, %p168
      %p171 = scmp.ne.s32.totalorder %s154, %s170
      %p172 = scmp.eq.s32.totalorder %s21, 0
      %p173 = por %p171, %p172
      %p174 = scmp.le.s32.totalorder 1, %s15
      %p175 = scmp.lt.s32.totalorder %s15, 3
      %p176 = pnand %p174, %p175
      %p177 = pneg %p176
      // Predicated region
      $region9: #{tpu_custom_call.1} parent=5 // pred_check
        _
      $region10: #{tpu_custom_call.1} parent=5 // pred_check_branch
        %179 = sbr.rel (%p176) target = $region12
      $region11: #{tpu_custom_call.1} parent=5 // pred_region
        %s180 = ssub.s32 %s15, 1
        // Predicated region
        $region13: #{tpu_custom_call.1} parent=11 // pred_check
          %p181 = pneg %p140
        $region14: #{tpu_custom_call.1} parent=11 // pred_check_branch
          %183 = sbr.rel (%p181) target = $region16
        $region15: #{tpu_custom_call.1} parent=11 // pred_region
          %185 = vsyncadd [#allocation3], 0
          %s186 = sshll.u32 %s4, 4
          %s187 = int_to_ptr.hbm [resolvable:$true] %s186
          %s188 = sshll.u32 [#allocation2], 4
          %s189 = int_to_ptr.vmem [resolvable:$true] %s188
          %194 = dma.hbm_to_vmem [thread:$0]  %s187, 2816, %s189, [#allocation3], 128, 128, 8
        $region16: #{tpu_custom_call.1} parent=11 // pred_fallthru
          _
      $region12: #{tpu_custom_call.1} parent=5 // pred_fallthru
        _
      %p195 = scmp.lt.s32.totalorder %s15, 2
      // Predicated region
      $region17: #{tpu_custom_call.1} parent=5 // pred_check
        %p196 = pneg %p195
      $region18: #{tpu_custom_call.1} parent=5 // pred_check_branch
        %198 = sbr.rel (%p196) target = $region20
      $region19: #{tpu_custom_call.1} parent=5 // pred_region
        // Predicated region
        $region21: #{tpu_custom_call.1} parent=19 // pred_check
          %p199 = pneg %p35
        $region22: #{tpu_custom_call.1} parent=19 // pred_check_branch
          %201 = sbr.rel (%p199) target = $region24
        $region23: #{tpu_custom_call.1} parent=19 // pred_region
          %p202 = scmp.lt.s32.totalorder %s15, 1
          %s203 = scalar_select %p202, %s15, 1
          %s204 = smul.addr %s203, 4
          %s205 = smul.addr %s204, 8
          %s206 = scalar_lea.vmem %s0, %s205
        $region24: #{tpu_custom_call.1} parent=19 // pred_fallthru
          _
        // Predicated region
        $region25: #{tpu_custom_call.1} parent=19 // pred_check
          %p207 = pneg %p61
        $region26: #{tpu_custom_call.1} parent=19 // pred_check_branch
          %209 = sbr.rel (%p207) target = $region28
        $region27: #{tpu_custom_call.1} parent=19 // pred_region
          %p210 = scmp.lt.s32.totalorder %s15, 1
          %s211 = scalar_select %p210, %s15, 1
          %s212 = smul.addr %s211, 4
          %s213 = smul.addr %s212, 8
          %s214 = scalar_lea.vmem %s1, %s213
        $region28: #{tpu_custom_call.1} parent=19 // pred_fallthru
          _
        // Predicated region
        $region29: #{tpu_custom_call.1} parent=19 // pred_check
          %p215 = pneg %p87
        $region30: #{tpu_custom_call.1} parent=19 // pred_check_branch
          %217 = sbr.rel (%p215) target = $region32
        $region31: #{tpu_custom_call.1} parent=19 // pred_region
          %p218 = scmp.lt.s32.totalorder %s15, 1
          %s219 = scalar_select %p218, %s15, 1
          %s220 = smul.addr %s219, 4
          %s221 = smul.addr %s220, 8
          %s222 = scalar_lea.vmem %s2, %s221
        $region32: #{tpu_custom_call.1} parent=19 // pred_fallthru
          _
        // Predicated region
        $region33: #{tpu_custom_call.1} parent=19 // pred_check
          %p223 = pneg %p113
        $region34: #{tpu_custom_call.1} parent=19 // pred_check_branch
          %225 = sbr.rel (%p223) target = $region36
        $region35: #{tpu_custom_call.1} parent=19 // pred_region
          %p226 = scmp.lt.s32.totalorder %s15, 1
          %s227 = scalar_select %p226, %s15, 1
          %s228 = smul.addr %s227, 4
          %s229 = smul.addr %s228, 8
          %s230 = scalar_lea.vmem %s3, %s229
        $region36: #{tpu_custom_call.1} parent=19 // pred_fallthru
          _
      $region20: #{tpu_custom_call.1} parent=5 // pred_fallthru
        _
      %p231 = scmp.le.s32.totalorder 1, %s15
      %p232 = scmp.lt.s32.totalorder %s15, 3
      %p233 = pnand %p231, %p232
      %p234 = pneg %p233
      // Predicated region
      $region37: #{tpu_custom_call.1} parent=5 // pred_check
        _
      $region38: #{tpu_custom_call.1} parent=5 // pred_check_branch
        %236 = sbr.rel (%p233) target = $region40
      $region39: #{tpu_custom_call.1} parent=5 // pred_region
        %s237 = ssub.s32 %s15, 1
        // Predicated region
        $region41: #{tpu_custom_call.1} parent=39 // pred_check
          %p238 = pneg %p140
        $region42: #{tpu_custom_call.1} parent=39 // pred_check_branch
          %240 = sbr.rel (%p238) target = $region44
        $region43: #{tpu_custom_call.1} parent=39 // pred_region
          %242 = dma.done [#allocation3], 2816
        $region44: #{tpu_custom_call.1} parent=39 // pred_fallthru
          _
        %p243 = scmp.lt.s32.totalorder %s20, 1
        %s244 = scalar_select %p243, %s20, 1
        %s245 = smul.addr %s244, 4
        %s246 = smul.addr %s245, 8
        %s247 = scalar_lea.vmem %s0, %s246
        %p248 = pneg %p41
        %p249 = pneg %p38
        %p250 = scmp.lt.s32.totalorder %s20, 1
        %s251 = scalar_select %p250, %s20, 1
        %s252 = smul.addr %s251, 4
        %s253 = smul.addr %s252, 8
        %s254 = scalar_lea.vmem %s1, %s253
        %p255 = pneg %p67
        %p256 = pneg %p64
        %p257 = scmp.lt.s32.totalorder %s20, 1
        %s258 = scalar_select %p257, %s20, 1
        %s259 = smul.addr %s258, 4
        %s260 = smul.addr %s259, 8
        %s261 = scalar_lea.vmem %s2, %s260
        %p262 = pneg %p93
        %p263 = pneg %p90
        %p264 = scmp.lt.s32.totalorder %s20, 1
        %s265 = scalar_select %p264, %s20, 1
        %s266 = smul.addr %s265, 4
        %s267 = smul.addr %s266, 8
        %s268 = scalar_lea.vmem %s3, %s267
        %p269 = pneg %p119
        %p270 = pneg %p116
        %p271 = pneg %p140
        %p272 = pneg %p137
        %p273 = pneg %p166
        %p274 = pneg %p163
        %s275 = sand.u32 %s153, 1
        %s276 = scalar_lea.sflag [#allocation4], %s275
        %s277 = sand.u32 %s153, 1
        %s278 = scalar_lea.vmem [#allocation5], %s277
        %p279 = scmp.lt.s32.totalorder %s20, 1
        %s280 = scalar_select %p279, %s20, 1
        %s281 = smul.addr %s280, 4
        %s282 = smul.addr %s281, 8
        %s283 = scalar_lea.vmem %s0, %s282
        %p284 = scmp.lt.s32.totalorder %s20, 1
        %s285 = scalar_select %p284, %s20, 1
        %s286 = smul.addr %s285, 4
        %s287 = smul.addr %s286, 8
        %s288 = scalar_lea.vmem %s1, %s287
        %p289 = scmp.lt.s32.totalorder %s20, 1
        %s290 = scalar_select %p289, %s20, 1
        %s291 = smul.addr %s290, 4
        %s292 = smul.addr %s291, 8
        %s293 = scalar_lea.vmem %s2, %s292
        %p294 = scmp.lt.s32.totalorder %s20, 1
        %s295 = scalar_select %p294, %s20, 1
        %s296 = smul.addr %s295, 4
        %s297 = smul.addr %s296, 8
        %s298 = scalar_lea.vmem %s3, %s297
        %v300 = vld [vmem:[%s283] sm:$0xff]
        %v301 = vld [vmem:[%s283 + $0x8] sm:$0xff]
        %v302 = vld [vmem:[%s283 + $0x10] sm:$0xff]
        %v303 = vld [vmem:[%s283 + $0x18] sm:$0xff]
        %v304 = vld [vmem:[%s288] sm:$0xff]
        %v305 = vld [vmem:[%s288 + $0x8] sm:$0xff]
        %v306 = vld [vmem:[%s288 + $0x10] sm:$0xff]
        %v307 = vld [vmem:[%s288 + $0x18] sm:$0xff]
        %v308 = vld [vmem:[%s293] sm:$0xff]
        %v309 = vld [vmem:[%s293 + $0x8] sm:$0xff]
        %v310 = vld [vmem:[%s293 + $0x10] sm:$0xff]
        %v311 = vld [vmem:[%s293 + $0x18] sm:$0xff]
        %v312 = vld [vmem:[%s298] sm:$0xff]
        %v313 = vld [vmem:[%s298 + $0x8] sm:$0xff]
        %v314 = vld [vmem:[%s298 + $0x10] sm:$0xff]
        %v315 = vld [vmem:[%s298 + $0x18] sm:$0xff]
        %v316 = vpack.c.bf16 %v305, %v304
        %v317 = vpack.c.bf16 %v307, %v306
        %v318 = vpack.c.bf16 %v309, %v308
        %v319 = vpack.c.bf16 %v311, %v310
        %v320 = vld [vmem:[#allocation2] sm:$0x3]
        %v321 = vld [vmem:[#allocation2 + $0x8] sm:$0x1]
        %v322 = vunpack.c.l.bf16 %v321
        %v323 = vld [vmem:[#allocation2 + $0x70] sm:$0x1]
        %v324 = vunpack.c.l.bf16 %v323
        %v325 = vld [vmem:[#allocation2 + $0x74] sm:$0x1]
        %v326 = vunpack.c.l.bf16 %v325
        %v327 = vld [vmem:[#allocation2 + $0x78] sm:$0xf]
        %v328 = vld [vmem:[#allocation2 + $0x80] sm:$0xf]
        %v329 = vld [vmem:[#allocation2 + $0x88] sm:$0xf]
        %v330 = vld [vmem:[#allocation2 + $0x90] sm:$0xf]
        %v331 = vld [vmem:[#allocation2 + $0x98] sm:$0x1]
        %v332 = vunpack.c.l.bf16 %v331
        %v333 = vld [vmem:[#allocation2 + $0xa0] sm:$0x1]
        %v334 = vunpack.c.l.bf16 %v333
        %v335 = vpack.c.bf16 %v301, %v300
        %v336 = vpack.c.bf16 %v303, %v302
        %vm337 = vcmask 31744
        %v339 = vsel %vm337, %v335, 0
        %v342 = vsel %vm337, %v336, 0
        %vm344 = vcmask 1041408
        %v346 = vsel %vm344, %v320, 0
        %348 = vmatpush.bf16.msra.mxu0 0
        %349 = vmatpush.bf16.msra.mxu0 0
        %350 = vmatpush.bf16.msra.mxu0 0
        %351 = vmatpush.bf16.msra.mxu0 0
        %352 = vmatpush.bf16.msra.mxu0 0
        %353 = vmatpush.bf16.msra.mxu0 0
        %354 = vmatpush.bf16.msra.mxu0 0
        %355 = vmatpush.bf16.msra.mxu0 %v346
        %356 = vmatmul.bf16.gmra.mxu0 %v339
        %v357 = vpop.f32.mrf.mxu0
        %v358 = vadd.f32 0.0, %v357
        %v359 = vpop.f32.mrf.mxu0
        %v360 = vadd.f32 0.0, %v359
        %361 = vmatmul.bf16.gmra.mxu0 %v342
        %v362 = vpop.f32.mrf.mxu0
        %v363 = vadd.f32 0.0, %v362
        %v364 = vpop.f32.mrf.mxu0
        %v365 = vadd.f32 0.0, %v364
        %366 = vdwg.mxu0
        %v367 = vpack.c.bf16 %v360, %v358
        %v368 = vpack.c.bf16 %v365, %v363
        %v369 = vperm.slane %v322, 0
        %vm370 = vcmask 261120
        %v372 = vsel %vm370, %v316, 0
        %v375 = vsel %vm370, %v317, 0
        %377 = vmatpush.bf16.msra.mxu0 0
        %378 = vmatpush.bf16.msra.mxu0 0
        %379 = vmatpush.bf16.msra.mxu0 0
        %380 = vmatpush.bf16.msra.mxu0 0
        %381 = vmatpush.bf16.msra.mxu0 0
        %382 = vmatpush.bf16.msra.mxu0 0
        %383 = vmatpush.bf16.msra.mxu0 %v368
        %384 = vmatpush.bf16.msra.mxu0 %v367
        %385 = vmatmul.bf16.gmra.mxu0 %v372
        %v386 = vpop.f32.mrf.mxu0
        %v387 = vadd.f32 %v369, %v386
        %v388 = vpop.f32.mrf.mxu0
        %v389 = vadd.f32 %v369, %v388
        %390 = vmatmul.bf16.gmra.mxu0 %v375
        %v391 = vpop.f32.mrf.mxu0
        %v392 = vadd.f32 %v369, %v391
        %v393 = vpop.f32.mrf.mxu0
        %v394 = vadd.f32 %v369, %v393
        %395 = vdwg.mxu0
        %vm396 = vcmp.gt.f32.partialorder %v387, 0.0
        %vm397 = vcmp.gt.f32.partialorder %v389, 0.0
        %vm398 = vcmp.gt.f32.partialorder %v392, 0.0
        %vm399 = vcmp.gt.f32.partialorder %v394, 0.0
        %v400 = vmul.f32 %v387, 0.01
        %v401 = vmul.f32 %v389, 0.01
        %v402 = vmul.f32 %v392, 0.01
        %v403 = vmul.f32 %v394, 0.01
        %v404 = vsel %vm396, %v387, %v400
        %v405 = vsel %vm397, %v389, %v401
        %v406 = vsel %vm398, %v392, %v402
        %v407 = vsel %vm399, %v394, %v403
        %v408 = vld [vmem:[#allocation2 + $0x10] sm:$0xff]
        %v409 = vld [vmem:[#allocation2 + $0x18] sm:$0xff]
        %v410 = vld [vmem:[#allocation2 + $0x20] sm:$0xff]
        %v411 = vld [vmem:[#allocation2 + $0x28] sm:$0xff]
        %v412 = vpack.c.bf16 %v405, %v404
        %v413 = vpack.c.bf16 %v407, %v406
        %v418 = vunpack.c.l.b16 %v408
        %v419 = vunpack.c.h.b16 %v408
        %v420 = vunpack.c.l.b16 %v409
        %v421 = vunpack.c.h.b16 %v409
        %v422 = vunpack.c.l.b16 %v410
        %v423 = vunpack.c.h.b16 %v410
        %v424 = vunpack.c.l.b16 %v411
        %v425 = vunpack.c.h.b16 %v411
        %v426 = vpack.c.b16 %v420, %v418
        %v427 = vpack.c.b16 %v421, %v419
        %v428 = vpack.c.b16 %v424, %v422
        %v429 = vpack.c.b16 %v425, %v423
        %v435 = vsel %vm370, %v412, 0
        %v438 = vsel %vm370, %v413, 0
        %440 = vmatpush.bf16.msra.mxu0 0
        %441 = vmatpush.bf16.msra.mxu0 0
        %442 = vmatpush.bf16.msra.mxu0 0
        %443 = vmatpush.bf16.msra.mxu0 0
        %444 = vmatpush.bf16.msra.mxu0 0
        %445 = vmatpush.bf16.msra.mxu0 0
        %446 = vmatpush.bf16.msra.mxu0 %v428
        %447 = vmatpush.bf16.msra.mxu0 %v426
        %448 = vmatmul.bf16.gmra.mxu0 %v435
        %v449 = vpop.f32.mrf.mxu0
        %v450 = vadd.f32 0.0, %v449
        %v451 = vpop.f32.mrf.mxu0
        %v452 = vadd.f32 0.0, %v451
        %453 = vmatmul.bf16.gmra.mxu0 %v438
        %v454 = vpop.f32.mrf.mxu0
        %v455 = vadd.f32 0.0, %v454
        %v456 = vpop.f32.mrf.mxu0
        %v457 = vadd.f32 0.0, %v456
        %458 = vdwg.mxu0
        %459 = vmatpush.bf16.msra.mxu0 0
        %460 = vmatpush.bf16.msra.mxu0 0
        %461 = vmatpush.bf16.msra.mxu0 0
        %462 = vmatpush.bf16.msra.mxu0 0
        %463 = vmatpush.bf16.msra.mxu0 0
        %464 = vmatpush.bf16.msra.mxu0 0
        %465 = vmatpush.bf16.msra.mxu0 %v429
        %466 = vmatpush.bf16.msra.mxu0 %v427
        %467 = vmatmul.bf16.gmra.mxu0 %v435
        %v468 = vpop.f32.mrf.mxu0
        %v469 = vadd.f32 0.0, %v468
        %v470 = vpop.f32.mrf.mxu0
        %v471 = vadd.f32 0.0, %v470
        %472 = vmatmul.bf16.gmra.mxu0 %v438
        %v473 = vpop.f32.mrf.mxu0
        %v474 = vadd.f32 0.0, %v473
        %v475 = vpop.f32.mrf.mxu0
        %v476 = vadd.f32 0.0, %v475
        %477 = vdwg.mxu0
        %v478 = vpack.c.bf16 %v452, %v450
        %v479 = vpack.c.bf16 %v457, %v455
        %v480 = vperm.slane %v324, 0
        %v482 = vsel %vm370, %v318, 0
        %v485 = vsel %vm370, %v319, 0
        %487 = vmatpush.bf16.msra.mxu0 0
        %488 = vmatpush.bf16.msra.mxu0 0
        %489 = vmatpush.bf16.msra.mxu0 0
        %490 = vmatpush.bf16.msra.mxu0 0
        %491 = vmatpush.bf16.msra.mxu0 0
        %492 = vmatpush.bf16.msra.mxu0 0
        %493 = vmatpush.bf16.msra.mxu0 %v479
        %494 = vmatpush.bf16.msra.mxu0 %v478
        %495 = vmatmul.bf16.gmra.mxu0 %v482
        %v496 = vpop.f32.mrf.mxu0
        %v497 = vadd.f32 %v480, %v496
        %v498 = vpop.f32.mrf.mxu0
        %v499 = vadd.f32 %v480, %v498
        %500 = vmatmul.bf16.gmra.mxu0 %v485
        %v501 = vpop.f32.mrf.mxu0
        %v502 = vadd.f32 %v480, %v501
        %v503 = vpop.f32.mrf.mxu0
        %v504 = vadd.f32 %v480, %v503
        %505 = vdwg.mxu0
        %v506 = vperm.slane %v326, 0
        %v507 = vadd.f32 %v469, %v506
        %v508 = vadd.f32 %v471, %v506
        %v509 = vadd.f32 %v474, %v506
        %v510 = vadd.f32 %v476, %v506
        %v511 = vadd.f32 %v497, %v507
        %v512 = vadd.f32 %v499, %v508
        %v513 = vadd.f32 %v502, %v509
        %v514 = vadd.f32 %v504, %v510
        %v515 = vxor.u32 %v511, 2147483648
        %v516 = vxor.u32 %v512, 2147483648
        %v517 = vxor.u32 %v513, 2147483648
        %v518 = vxor.u32 %v514, 2147483648
        %v519 = vmul.f32 %v515, 1.442695
        %v520 = vpow.pop %v519
        %v521 = vmul.f32 %v516, 1.442695
        %v522 = vpow.pop %v521
        %v523 = vmul.f32 %v517, 1.442695
        %v524 = vpow.pop %v523
        %v525 = vmul.f32 %v518, 1.442695
        %v526 = vpow.pop %v525
        %v527 = vadd.f32 %v520, 1.0
        %v528 = vadd.f32 %v522, 1.0
        %v529 = vadd.f32 %v524, 1.0
        %v530 = vadd.f32 %v526, 1.0
        %v531 = vrcp.pop %v527
        %v532 = vmul.f32 %v527, %v531
        %v533 = vsub.f32 1.0, %v532
        %v534 = vmul.f32 %v531, %v533
        %v535 = vadd.f32 %v531, %v534
        %vm536 = vweird.f32 %v527
        %vm537 = vweird.f32 %v531
        %vm538 = vmor %vm536, %vm537
        %v539 = vsel %vm538, %v531, %v535
        %v540 = vand.u32 2147483647, %v527
        %vm541 = vcmp.eq.f32.partialorder %v540, 8.507059e+37
        %v542 = vand.u32 %v527, 2147483648
        %v543 = vor.u32 1.1754944e-38, %v542
        %v544 = vsel %vm541, %v543, %v539
        %v545 = vmul.f32 1.0, %v544
        %v546 = vrcp.pop %v528
        %v547 = vmul.f32 %v528, %v546
        %v548 = vsub.f32 1.0, %v547
        %v549 = vmul.f32 %v546, %v548
        %v550 = vadd.f32 %v546, %v549
        %vm551 = vweird.f32 %v528
        %vm552 = vweird.f32 %v546
        %vm553 = vmor %vm551, %vm552
        %v554 = vsel %vm553, %v546, %v550
        %v555 = vand.u32 2147483647, %v528
        %vm556 = vcmp.eq.f32.partialorder %v555, 8.507059e+37
        %v557 = vand.u32 %v528, 2147483648
        %v558 = vor.u32 1.1754944e-38, %v557
        %v559 = vsel %vm556, %v558, %v554
        %v560 = vmul.f32 1.0, %v559
        %v561 = vrcp.pop %v529
        %v562 = vmul.f32 %v529, %v561
        %v563 = vsub.f32 1.0, %v562
        %v564 = vmul.f32 %v561, %v563
        %v565 = vadd.f32 %v561, %v564
        %vm566 = vweird.f32 %v529
        %vm567 = vweird.f32 %v561
        %vm568 = vmor %vm566, %vm567
        %v569 = vsel %vm568, %v561, %v565
        %v570 = vand.u32 2147483647, %v529
        %vm571 = vcmp.eq.f32.partialorder %v570, 8.507059e+37
        %v572 = vand.u32 %v529, 2147483648
        %v573 = vor.u32 1.1754944e-38, %v572
        %v574 = vsel %vm571, %v573, %v569
        %v575 = vmul.f32 1.0, %v574
        %v576 = vrcp.pop %v530
        %v577 = vmul.f32 %v530, %v576
        %v578 = vsub.f32 1.0, %v577
        %v579 = vmul.f32 %v576, %v578
        %v580 = vadd.f32 %v576, %v579
        %vm581 = vweird.f32 %v530
        %vm582 = vweird.f32 %v576
        %vm583 = vmor %vm581, %vm582
        %v584 = vsel %vm583, %v576, %v580
        %v585 = vand.u32 2147483647, %v530
        %vm586 = vcmp.eq.f32.partialorder %v585, 8.507059e+37
        %v587 = vand.u32 %v530, 2147483648
        %v588 = vor.u32 1.1754944e-38, %v587
        %v589 = vsel %vm586, %v588, %v584
        %v590 = vmul.f32 1.0, %v589
        %595 = vrot.lane.b32.xlu0 %v507, 64
        %v596 = vpop.permute.xlu0 %595
        %597 = vrot.lane.b32.xlu0 %v508, 64
        %v598 = vpop.permute.xlu0 %597
        %599 = vrot.lane.b32.xlu0 %v509, 64
        %v600 = vpop.permute.xlu0 %599
        %601 = vrot.lane.b32.xlu0 %v510, 64
        %v602 = vpop.permute.xlu0 %601
        %v607 = vmul.f32 %v545, %v596
        %v608 = vmul.f32 %v560, %v598
        %v609 = vmul.f32 %v575, %v600
        %v610 = vmul.f32 %v590, %v602
        %615 = vrot.lane.b32.xlu0 %v607, 64
        %v616 = vpop.permute.xlu0 %615
        %617 = vrot.lane.b32.xlu0 %v608, 64
        %v618 = vpop.permute.xlu0 %617
        %619 = vrot.lane.b32.xlu0 %v609, 64
        %v620 = vpop.permute.xlu0 %619
        %621 = vrot.lane.b32.xlu0 %v610, 64
        %v622 = vpop.permute.xlu0 %621
        %v627 = vadd.f32 %v497, %v616
        %v628 = vadd.f32 %v499, %v618
        %v629 = vadd.f32 %v502, %v620
        %v630 = vadd.f32 %v504, %v622
        %v631 = vtanh.pop %v627
        %v632 = vtanh.pop %v628
        %v633 = vtanh.pop %v629
        %v634 = vtanh.pop %v630
        %v635 = vsub.f32 1.0, %v545
        %v636 = vsub.f32 1.0, %v560
        %v637 = vsub.f32 1.0, %v575
        %v638 = vsub.f32 1.0, %v590
        %643 = vrot.lane.b32.xlu0 %v631, 96
        %v644 = vpop.permute.xlu0 %643
        %645 = vrot.lane.b32.xlu0 %v632, 96
        %v646 = vpop.permute.xlu0 %645
        %647 = vrot.lane.b32.xlu0 %v633, 96
        %v648 = vpop.permute.xlu0 %647
        %649 = vrot.lane.b32.xlu0 %v634, 96
        %v650 = vpop.permute.xlu0 %649
        %v655 = vmul.f32 %v635, %v644
        %v656 = vmul.f32 %v636, %v646
        %v657 = vmul.f32 %v637, %v648
        %v658 = vmul.f32 %v638, %v650
        %663 = vrot.lane.b32.xlu0 %v404, 32
        %v664 = vpop.permute.xlu0 %663
        %665 = vrot.lane.b32.xlu0 %v405, 32
        %v666 = vpop.permute.xlu0 %665
        %667 = vrot.lane.b32.xlu0 %v406, 32
        %v668 = vpop.permute.xlu0 %667
        %669 = vrot.lane.b32.xlu0 %v407, 32
        %v670 = vpop.permute.xlu0 %669
        %v675 = vmul.f32 %v545, %v664
        %v676 = vmul.f32 %v560, %v666
        %v677 = vmul.f32 %v575, %v668
        %v678 = vmul.f32 %v590, %v670
        %v679 = vadd.f32 %v655, %v675
        %v680 = vadd.f32 %v656, %v676
        %v681 = vadd.f32 %v657, %v677
        %v682 = vadd.f32 %v658, %v678
        %v683 = vld [vmem:[#allocation2 + $0x30] sm:$0xff]
        %v684 = vld [vmem:[#allocation2 + $0x38] sm:$0xff]
        %v685 = vld [vmem:[#allocation2 + $0x40] sm:$0xff]
        %v686 = vld [vmem:[#allocation2 + $0x48] sm:$0xff]
        %v687 = vpack.c.bf16 %v680, %v679
        %v688 = vpack.c.bf16 %v682, %v681
        %691 = vrot.lane.b32.xlu0 %v687, 96
        %v692 = vpop.permute.xlu0 %691
        %693 = vrot.lane.b32.xlu0 %v688, 96
        %v694 = vpop.permute.xlu0 %693
        %v699 = vunpack.c.l.b16 %v683
        %v700 = vunpack.c.h.b16 %v683
        %v701 = vunpack.c.l.b16 %v684
        %v702 = vunpack.c.h.b16 %v684
        %v703 = vunpack.c.l.b16 %v685
        %v704 = vunpack.c.h.b16 %v685
        %v705 = vunpack.c.l.b16 %v686
        %v706 = vunpack.c.h.b16 %v686
        %v707 = vpack.c.b16 %v701, %v699
        %v708 = vpack.c.b16 %v702, %v700
        %v709 = vpack.c.b16 %v705, %v703
        %v710 = vpack.c.b16 %v706, %v704
        %v716 = vsel %vm370, %v692, 0
        %v719 = vsel %vm370, %v694, 0
        %721 = vmatpush.bf16.msra.mxu0 0
        %722 = vmatpush.bf16.msra.mxu0 0
        %723 = vmatpush.bf16.msra.mxu0 0
        %724 = vmatpush.bf16.msra.mxu0 0
        %725 = vmatpush.bf16.msra.mxu0 0
        %726 = vmatpush.bf16.msra.mxu0 0
        %727 = vmatpush.bf16.msra.mxu0 %v709
        %728 = vmatpush.bf16.msra.mxu0 %v707
        %729 = vmatmul.bf16.gmra.mxu0 %v716
        %v730 = vpop.f32.mrf.mxu0
        %v731 = vadd.f32 0.0, %v730
        %v732 = vpop.f32.mrf.mxu0
        %v733 = vadd.f32 0.0, %v732
        %734 = vmatmul.bf16.gmra.mxu0 %v719
        %v735 = vpop.f32.mrf.mxu0
        %v736 = vadd.f32 0.0, %v735
        %v737 = vpop.f32.mrf.mxu0
        %v738 = vadd.f32 0.0, %v737
        %739 = vdwg.mxu0
        %740 = vmatpush.bf16.msra.mxu0 0
        %741 = vmatpush.bf16.msra.mxu0 0
        %742 = vmatpush.bf16.msra.mxu0 0
        %743 = vmatpush.bf16.msra.mxu0 0
        %744 = vmatpush.bf16.msra.mxu0 0
        %745 = vmatpush.bf16.msra.mxu0 0
        %746 = vmatpush.bf16.msra.mxu0 %v710
        %747 = vmatpush.bf16.msra.mxu0 %v708
        %748 = vmatmul.bf16.gmra.mxu0 %v716
        %v749 = vpop.f32.mrf.mxu0
        %v750 = vadd.f32 0.0, %v749
        %v751 = vpop.f32.mrf.mxu0
        %v752 = vadd.f32 0.0, %v751
        %753 = vmatmul.bf16.gmra.mxu0 %v719
        %v754 = vpop.f32.mrf.mxu0
        %v755 = vadd.f32 0.0, %v754
        %v756 = vpop.f32.mrf.mxu0
        %v757 = vadd.f32 0.0, %v756
        %758 = vdwg.mxu0
        %v759 = vpack.c.bf16 %v733, %v731
        %v760 = vpack.c.bf16 %v738, %v736
        %761 = vmatpush.bf16.msra.mxu0 0
        %762 = vmatpush.bf16.msra.mxu0 0
        %763 = vmatpush.bf16.msra.mxu0 0
        %764 = vmatpush.bf16.msra.mxu0 0
        %765 = vmatpush.bf16.msra.mxu0 0
        %766 = vmatpush.bf16.msra.mxu0 0
        %767 = vmatpush.bf16.msra.mxu0 %v760
        %768 = vmatpush.bf16.msra.mxu0 %v759
        %769 = vmatmul.bf16.gmra.mxu0 %v482
        %v770 = vpop.f32.mrf.mxu0
        %v771 = vadd.f32 %v480, %v770
        %v772 = vpop.f32.mrf.mxu0
        %v773 = vadd.f32 %v480, %v772
        %774 = vmatmul.bf16.gmra.mxu0 %v485
        %v775 = vpop.f32.mrf.mxu0
        %v776 = vadd.f32 %v480, %v775
        %v777 = vpop.f32.mrf.mxu0
        %v778 = vadd.f32 %v480, %v777
        %779 = vdwg.mxu0
        %v780 = vadd.f32 %v750, %v506
        %v781 = vadd.f32 %v752, %v506
        %v782 = vadd.f32 %v755, %v506
        %v783 = vadd.f32 %v757, %v506
        %v784 = vadd.f32 %v771, %v780
        %v785 = vadd.f32 %v773, %v781
        %v786 = vadd.f32 %v776, %v782
        %v787 = vadd.f32 %v778, %v783
        %v788 = vxor.u32 %v784, 2147483648
        %v789 = vxor.u32 %v785, 2147483648
        %v790 = vxor.u32 %v786, 2147483648
        %v791 = vxor.u32 %v787, 2147483648
        %v792 = vmul.f32 %v788, 1.442695
        %v793 = vpow.pop %v792
        %v794 = vmul.f32 %v789, 1.442695
        %v795 = vpow.pop %v794
        %v796 = vmul.f32 %v790, 1.442695
        %v797 = vpow.pop %v796
        %v798 = vmul.f32 %v791, 1.442695
        %v799 = vpow.pop %v798
        %v800 = vadd.f32 %v793, 1.0
        %v801 = vadd.f32 %v795, 1.0
        %v802 = vadd.f32 %v797, 1.0
        %v803 = vadd.f32 %v799, 1.0
        %v804 = vrcp.pop %v800
        %v805 = vmul.f32 %v800, %v804
        %v806 = vsub.f32 1.0, %v805
        %v807 = vmul.f32 %v804, %v806
        %v808 = vadd.f32 %v804, %v807
        %vm809 = vweird.f32 %v800
        %vm810 = vweird.f32 %v804
        %vm811 = vmor %vm809, %vm810
        %v812 = vsel %vm811, %v804, %v808
        %v813 = vand.u32 2147483647, %v800
        %vm814 = vcmp.eq.f32.partialorder %v813, 8.507059e+37
        %v815 = vand.u32 %v800, 2147483648
        %v816 = vor.u32 1.1754944e-38, %v815
        %v817 = vsel %vm814, %v816, %v812
        %v818 = vmul.f32 1.0, %v817
        %v819 = vrcp.pop %v801
        %v820 = vmul.f32 %v801, %v819
        %v821 = vsub.f32 1.0, %v820
        %v822 = vmul.f32 %v819, %v821
        %v823 = vadd.f32 %v819, %v822
        %vm824 = vweird.f32 %v801
        %vm825 = vweird.f32 %v819
        %vm826 = vmor %vm824, %vm825
        %v827 = vsel %vm826, %v819, %v823
        %v828 = vand.u32 2147483647, %v801
        %vm829 = vcmp.eq.f32.partialorder %v828, 8.507059e+37
        %v830 = vand.u32 %v801, 2147483648
        %v831 = vor.u32 1.1754944e-38, %v830
        %v832 = vsel %vm829, %v831, %v827
        %v833 = vmul.f32 1.0, %v832
        %v834 = vrcp.pop %v802
        %v835 = vmul.f32 %v802, %v834
        %v836 = vsub.f32 1.0, %v835
        %v837 = vmul.f32 %v834, %v836
        %v838 = vadd.f32 %v834, %v837
        %vm839 = vweird.f32 %v802
        %vm840 = vweird.f32 %v834
        %vm841 = vmor %vm839, %vm840
        %v842 = vsel %vm841, %v834, %v838
        %v843 = vand.u32 2147483647, %v802
        %vm844 = vcmp.eq.f32.partialorder %v843, 8.507059e+37
        %v845 = vand.u32 %v802, 2147483648
        %v846 = vor.u32 1.1754944e-38, %v845
        %v847 = vsel %vm844, %v846, %v842
        %v848 = vmul.f32 1.0, %v847
        %v849 = vrcp.pop %v803
        %v850 = vmul.f32 %v803, %v849
        %v851 = vsub.f32 1.0, %v850
        %v852 = vmul.f32 %v849, %v851
        %v853 = vadd.f32 %v849, %v852
        %vm854 = vweird.f32 %v803
        %vm855 = vweird.f32 %v849
        %vm856 = vmor %vm854, %vm855
        %v857 = vsel %vm856, %v849, %v853
        %v858 = vand.u32 2147483647, %v803
        %vm859 = vcmp.eq.f32.partialorder %v858, 8.507059e+37
        %v860 = vand.u32 %v803, 2147483648
        %v861 = vor.u32 1.1754944e-38, %v860
        %v862 = vsel %vm859, %v861, %v857
        %v863 = vmul.f32 1.0, %v862
        %868 = vrot.lane.b32.xlu0 %v780, 64
        %v869 = vpop.permute.xlu0 %868
        %870 = vrot.lane.b32.xlu0 %v781, 64
        %v871 = vpop.permute.xlu0 %870
        %872 = vrot.lane.b32.xlu0 %v782, 64
        %v873 = vpop.permute.xlu0 %872
        %874 = vrot.lane.b32.xlu0 %v783, 64
        %v875 = vpop.permute.xlu0 %874
        %v880 = vmul.f32 %v818, %v869
        %v881 = vmul.f32 %v833, %v871
        %v882 = vmul.f32 %v848, %v873
        %v883 = vmul.f32 %v863, %v875
        %888 = vrot.lane.b32.xlu0 %v880, 64
        %v889 = vpop.permute.xlu0 %888
        %890 = vrot.lane.b32.xlu0 %v881, 64
        %v891 = vpop.permute.xlu0 %890
        %892 = vrot.lane.b32.xlu0 %v882, 64
        %v893 = vpop.permute.xlu0 %892
        %894 = vrot.lane.b32.xlu0 %v883, 64
        %v895 = vpop.permute.xlu0 %894
        %v900 = vadd.f32 %v771, %v889
        %v901 = vadd.f32 %v773, %v891
        %v902 = vadd.f32 %v776, %v893
        %v903 = vadd.f32 %v778, %v895
        %v904 = vtanh.pop %v900
        %v905 = vtanh.pop %v901
        %v906 = vtanh.pop %v902
        %v907 = vtanh.pop %v903
        %v908 = vsub.f32 1.0, %v818
        %v909 = vsub.f32 1.0, %v833
        %v910 = vsub.f32 1.0, %v848
        %v911 = vsub.f32 1.0, %v863
        %916 = vrot.lane.b32.xlu0 %v904, 96
        %v917 = vpop.permute.xlu0 %916
        %918 = vrot.lane.b32.xlu0 %v905, 96
        %v919 = vpop.permute.xlu0 %918
        %920 = vrot.lane.b32.xlu0 %v906, 96
        %v921 = vpop.permute.xlu0 %920
        %922 = vrot.lane.b32.xlu0 %v907, 96
        %v923 = vpop.permute.xlu0 %922
        %v928 = vmul.f32 %v908, %v917
        %v929 = vmul.f32 %v909, %v919
        %v930 = vmul.f32 %v910, %v921
        %v931 = vmul.f32 %v911, %v923
        %v932 = vmul.f32 %v818, %v679
        %v933 = vmul.f32 %v833, %v680
        %v934 = vmul.f32 %v848, %v681
        %v935 = vmul.f32 %v863, %v682
        %v936 = vadd.f32 %v928, %v932
        %v937 = vadd.f32 %v929, %v933
        %v938 = vadd.f32 %v930, %v934
        %v939 = vadd.f32 %v931, %v935
        %v940 = vld [vmem:[#allocation2 + $0x50] sm:$0xff]
        %v941 = vld [vmem:[#allocation2 + $0x58] sm:$0xff]
        %v942 = vld [vmem:[#allocation2 + $0x60] sm:$0xff]
        %v943 = vld [vmem:[#allocation2 + $0x68] sm:$0xff]
        %v944 = vpack.c.bf16 %v937, %v936
        %v945 = vpack.c.bf16 %v939, %v938
        %948 = vrot.lane.b32.xlu0 %v944, 96
        %v949 = vpop.permute.xlu0 %948
        %950 = vrot.lane.b32.xlu0 %v945, 96
        %v951 = vpop.permute.xlu0 %950
        %v956 = vunpack.c.l.b16 %v940
        %v957 = vunpack.c.h.b16 %v940
        %v958 = vunpack.c.l.b16 %v941
        %v959 = vunpack.c.h.b16 %v941
        %v960 = vunpack.c.l.b16 %v942
        %v961 = vunpack.c.h.b16 %v942
        %v962 = vunpack.c.l.b16 %v943
        %v963 = vunpack.c.h.b16 %v943
        %v964 = vpack.c.b16 %v958, %v956
        %v965 = vpack.c.b16 %v959, %v957
        %v966 = vpack.c.b16 %v962, %v960
        %v967 = vpack.c.b16 %v963, %v961
        %v973 = vsel %vm370, %v949, 0
        %v976 = vsel %vm370, %v951, 0
        %978 = vmatpush.bf16.msra.mxu0 0
        %979 = vmatpush.bf16.msra.mxu0 0
        %980 = vmatpush.bf16.msra.mxu0 0
        %981 = vmatpush.bf16.msra.mxu0 0
        %982 = vmatpush.bf16.msra.mxu0 0
        %983 = vmatpush.bf16.msra.mxu0 0
        %984 = vmatpush.bf16.msra.mxu0 %v966
        %985 = vmatpush.bf16.msra.mxu0 %v964
        %986 = vmatmul.bf16.gmra.mxu0 %v973
        %v987 = vpop.f32.mrf.mxu0
        %v988 = vadd.f32 0.0, %v987
        %v989 = vpop.f32.mrf.mxu0
        %v990 = vadd.f32 0.0, %v989
        %991 = vmatmul.bf16.gmra.mxu0 %v976
        %v992 = vpop.f32.mrf.mxu0
        %v993 = vadd.f32 0.0, %v992
        %v994 = vpop.f32.mrf.mxu0
        %v995 = vadd.f32 0.0, %v994
        %996 = vdwg.mxu0
        %997 = vmatpush.bf16.msra.mxu0 0
        %998 = vmatpush.bf16.msra.mxu0 0
        %999 = vmatpush.bf16.msra.mxu0 0
        %1000 = vmatpush.bf16.msra.mxu0 0
        %1001 = vmatpush.bf16.msra.mxu0 0
        %1002 = vmatpush.bf16.msra.mxu0 0
        %1003 = vmatpush.bf16.msra.mxu0 %v967
        %1004 = vmatpush.bf16.msra.mxu0 %v965
        %1005 = vmatmul.bf16.gmra.mxu0 %v973
        %v1006 = vpop.f32.mrf.mxu0
        %v1007 = vadd.f32 0.0, %v1006
        %v1008 = vpop.f32.mrf.mxu0
        %v1009 = vadd.f32 0.0, %v1008
        %1010 = vmatmul.bf16.gmra.mxu0 %v976
        %v1011 = vpop.f32.mrf.mxu0
        %v1012 = vadd.f32 0.0, %v1011
        %v1013 = vpop.f32.mrf.mxu0
        %v1014 = vadd.f32 0.0, %v1013
        %1015 = vdwg.mxu0
        %v1016 = vpack.c.bf16 %v990, %v988
        %v1017 = vpack.c.bf16 %v995, %v993
        %1018 = vmatpush.bf16.msra.mxu0 0
        %1019 = vmatpush.bf16.msra.mxu0 0
        %1020 = vmatpush.bf16.msra.mxu0 0
        %1021 = vmatpush.bf16.msra.mxu0 0
        %1022 = vmatpush.bf16.msra.mxu0 0
        %1023 = vmatpush.bf16.msra.mxu0 0
        %1024 = vmatpush.bf16.msra.mxu0 %v1017
        %1025 = vmatpush.bf16.msra.mxu0 %v1016
        %1026 = vmatmul.bf16.gmra.mxu0 %v482
        %v1027 = vpop.f32.mrf.mxu0
        %v1028 = vadd.f32 %v480, %v1027
        %v1029 = vpop.f32.mrf.mxu0
        %v1030 = vadd.f32 %v480, %v1029
        %1031 = vmatmul.bf16.gmra.mxu0 %v485
        %v1032 = vpop.f32.mrf.mxu0
        %v1033 = vadd.f32 %v480, %v1032
        %v1034 = vpop.f32.mrf.mxu0
        %v1035 = vadd.f32 %v480, %v1034
        %1036 = vdwg.mxu0
        %v1037 = vadd.f32 %v1007, %v506
        %v1038 = vadd.f32 %v1009, %v506
        %v1039 = vadd.f32 %v1012, %v506
        %v1040 = vadd.f32 %v1014, %v506
        %v1041 = vadd.f32 %v1028, %v1037
        %v1042 = vadd.f32 %v1030, %v1038
        %v1043 = vadd.f32 %v1033, %v1039
        %v1044 = vadd.f32 %v1035, %v1040
        %v1045 = vxor.u32 %v1041, 2147483648
        %v1046 = vxor.u32 %v1042, 2147483648
        %v1047 = vxor.u32 %v1043, 2147483648
        %v1048 = vxor.u32 %v1044, 2147483648
        %v1049 = vmul.f32 %v1045, 1.442695
        %v1050 = vpow.pop %v1049
        %v1051 = vmul.f32 %v1046, 1.442695
        %v1052 = vpow.pop %v1051
        %v1053 = vmul.f32 %v1047, 1.442695
        %v1054 = vpow.pop %v1053
        %v1055 = vmul.f32 %v1048, 1.442695
        %v1056 = vpow.pop %v1055
        %v1057 = vadd.f32 %v1050, 1.0
        %v1058 = vadd.f32 %v1052, 1.0
        %v1059 = vadd.f32 %v1054, 1.0
        %v1060 = vadd.f32 %v1056, 1.0
        %v1061 = vrcp.pop %v1057
        %v1062 = vmul.f32 %v1057, %v1061
        %v1063 = vsub.f32 1.0, %v1062
        %v1064 = vmul.f32 %v1061, %v1063
        %v1065 = vadd.f32 %v1061, %v1064
        %vm1066 = vweird.f32 %v1057
        %vm1067 = vweird.f32 %v1061
        %vm1068 = vmor %vm1066, %vm1067
        %v1069 = vsel %vm1068, %v1061, %v1065
        %v1070 = vand.u32 2147483647, %v1057
        %vm1071 = vcmp.eq.f32.partialorder %v1070, 8.507059e+37
        %v1072 = vand.u32 %v1057, 2147483648
        %v1073 = vor.u32 1.1754944e-38, %v1072
        %v1074 = vsel %vm1071, %v1073, %v1069
        %v1075 = vmul.f32 1.0, %v1074
        %v1076 = vrcp.pop %v1058
        %v1077 = vmul.f32 %v1058, %v1076
        %v1078 = vsub.f32 1.0, %v1077
        %v1079 = vmul.f32 %v1076, %v1078
        %v1080 = vadd.f32 %v1076, %v1079
        %vm1081 = vweird.f32 %v1058
        %vm1082 = vweird.f32 %v1076
        %vm1083 = vmor %vm1081, %vm1082
        %v1084 = vsel %vm1083, %v1076, %v1080
        %v1085 = vand.u32 2147483647, %v1058
        %vm1086 = vcmp.eq.f32.partialorder %v1085, 8.507059e+37
        %v1087 = vand.u32 %v1058, 2147483648
        %v1088 = vor.u32 1.1754944e-38, %v1087
        %v1089 = vsel %vm1086, %v1088, %v1084
        %v1090 = vmul.f32 1.0, %v1089
        %v1091 = vrcp.pop %v1059
        %v1092 = vmul.f32 %v1059, %v1091
        %v1093 = vsub.f32 1.0, %v1092
        %v1094 = vmul.f32 %v1091, %v1093
        %v1095 = vadd.f32 %v1091, %v1094
        %vm1096 = vweird.f32 %v1059
        %vm1097 = vweird.f32 %v1091
        %vm1098 = vmor %vm1096, %vm1097
        %v1099 = vsel %vm1098, %v1091, %v1095
        %v1100 = vand.u32 2147483647, %v1059
        %vm1101 = vcmp.eq.f32.partialorder %v1100, 8.507059e+37
        %v1102 = vand.u32 %v1059, 2147483648
        %v1103 = vor.u32 1.1754944e-38, %v1102
        %v1104 = vsel %vm1101, %v1103, %v1099
        %v1105 = vmul.f32 1.0, %v1104
        %v1106 = vrcp.pop %v1060
        %v1107 = vmul.f32 %v1060, %v1106
        %v1108 = vsub.f32 1.0, %v1107
        %v1109 = vmul.f32 %v1106, %v1108
        %v1110 = vadd.f32 %v1106, %v1109
        %vm1111 = vweird.f32 %v1060
        %vm1112 = vweird.f32 %v1106
        %vm1113 = vmor %vm1111, %vm1112
        %v1114 = vsel %vm1113, %v1106, %v1110
        %v1115 = vand.u32 2147483647, %v1060
        %vm1116 = vcmp.eq.f32.partialorder %v1115, 8.507059e+37
        %v1117 = vand.u32 %v1060, 2147483648
        %v1118 = vor.u32 1.1754944e-38, %v1117
        %v1119 = vsel %vm1116, %v1118, %v1114
        %v1120 = vmul.f32 1.0, %v1119
        %1125 = vrot.lane.b32.xlu0 %v1037, 64
        %v1126 = vpop.permute.xlu0 %1125
        %1127 = vrot.lane.b32.xlu0 %v1038, 64
        %v1128 = vpop.permute.xlu0 %1127
        %1129 = vrot.lane.b32.xlu0 %v1039, 64
        %v1130 = vpop.permute.xlu0 %1129
        %1131 = vrot.lane.b32.xlu0 %v1040, 64
        %v1132 = vpop.permute.xlu0 %1131
        %v1137 = vmul.f32 %v1075, %v1126
        %v1138 = vmul.f32 %v1090, %v1128
        %v1139 = vmul.f32 %v1105, %v1130
        %v1140 = vmul.f32 %v1120, %v1132
        %1145 = vrot.lane.b32.xlu0 %v1137, 64
        %v1146 = vpop.permute.xlu0 %1145
        %1147 = vrot.lane.b32.xlu0 %v1138, 64
        %v1148 = vpop.permute.xlu0 %1147
        %1149 = vrot.lane.b32.xlu0 %v1139, 64
        %v1150 = vpop.permute.xlu0 %1149
        %1151 = vrot.lane.b32.xlu0 %v1140, 64
        %v1152 = vpop.permute.xlu0 %1151
        %v1157 = vadd.f32 %v1028, %v1146
        %v1158 = vadd.f32 %v1030, %v1148
        %v1159 = vadd.f32 %v1033, %v1150
        %v1160 = vadd.f32 %v1035, %v1152
        %v1161 = vtanh.pop %v1157
        %v1162 = vtanh.pop %v1158
        %v1163 = vtanh.pop %v1159
        %v1164 = vtanh.pop %v1160
        %v1165 = vsub.f32 1.0, %v1075
        %v1166 = vsub.f32 1.0, %v1090
        %v1167 = vsub.f32 1.0, %v1105
        %v1168 = vsub.f32 1.0, %v1120
        %1173 = vrot.lane.b32.xlu0 %v1161, 96
        %v1174 = vpop.permute.xlu0 %1173
        %1175 = vrot.lane.b32.xlu0 %v1162, 96
        %v1176 = vpop.permute.xlu0 %1175
        %1177 = vrot.lane.b32.xlu0 %v1163, 96
        %v1178 = vpop.permute.xlu0 %1177
        %1179 = vrot.lane.b32.xlu0 %v1164, 96
        %v1180 = vpop.permute.xlu0 %1179
        %v1185 = vmul.f32 %v1165, %v1174
        %v1186 = vmul.f32 %v1166, %v1176
        %v1187 = vmul.f32 %v1167, %v1178
        %v1188 = vmul.f32 %v1168, %v1180
        %v1189 = vmul.f32 %v1075, %v936
        %v1190 = vmul.f32 %v1090, %v937
        %v1191 = vmul.f32 %v1105, %v938
        %v1192 = vmul.f32 %v1120, %v939
        %v1193 = vadd.f32 %v1185, %v1189
        %v1194 = vadd.f32 %v1186, %v1190
        %v1195 = vadd.f32 %v1187, %v1191
        %v1196 = vadd.f32 %v1188, %v1192
        %vm1197 = vcmp.gt.f32.partialorder %v1193, 0.0
        %vm1198 = vcmp.gt.f32.partialorder %v1194, 0.0
        %vm1199 = vcmp.gt.f32.partialorder %v1195, 0.0
        %vm1200 = vcmp.gt.f32.partialorder %v1196, 0.0
        %v1201 = vmul.f32 %v1193, 0.01
        %v1202 = vmul.f32 %v1194, 0.01
        %v1203 = vmul.f32 %v1195, 0.01
        %v1204 = vmul.f32 %v1196, 0.01
        %v1205 = vsel %vm1197, %v1193, %v1201
        %v1206 = vsel %vm1198, %v1194, %v1202
        %v1207 = vsel %vm1199, %v1195, %v1203
        %v1208 = vsel %vm1200, %v1196, %v1204
        %v1209 = vadd.f32 %v1205, %v664
        %v1210 = vadd.f32 %v1206, %v666
        %v1211 = vadd.f32 %v1207, %v668
        %v1212 = vadd.f32 %v1208, %v670
        %v1213 = vpack.c.bf16 %v1210, %v1209
        %v1214 = vpack.c.bf16 %v1212, %v1211
        %v1215 = vperm.slane %v332, 0
        %1218 = vrot.lane.b32.xlu0 %v1213, 96
        %v1219 = vpop.permute.xlu0 %1218
        %1220 = vrot.lane.b32.xlu0 %v1214, 96
        %v1221 = vpop.permute.xlu0 %1220
        %v1226 = vunpack.c.l.b16 %v327
        %v1227 = vunpack.c.l.b16 %v328
        %v1228 = vunpack.c.l.b16 %v329
        %v1229 = vunpack.c.l.b16 %v330
        %v1230 = vpack.c.b16 %v1227, %v1226
        %v1231 = vpack.c.b16 %v1229, %v1228
        %v1235 = vsel %vm370, %v1219, 0
        %v1238 = vsel %vm370, %v1221, 0
        %1240 = vmatpush.bf16.msra.mxu0 0
        %1241 = vmatpush.bf16.msra.mxu0 0
        %1242 = vmatpush.bf16.msra.mxu0 0
        %1243 = vmatpush.bf16.msra.mxu0 0
        %1244 = vmatpush.bf16.msra.mxu0 0
        %1245 = vmatpush.bf16.msra.mxu0 0
        %1246 = vmatpush.bf16.msra.mxu0 %v1231
        %1247 = vmatpush.bf16.msra.mxu0 %v1230
        %1248 = vmatmul.bf16.gmra.mxu0 %v1235
        %v1249 = vpop.f32.mrf.mxu0
        %v1250 = vadd.f32 %v1215, %v1249
        %v1251 = vpop.f32.mrf.mxu0
        %v1252 = vadd.f32 %v1215, %v1251
        %1253 = vmatmul.bf16.gmra.mxu0 %v1238
        %v1254 = vpop.f32.mrf.mxu0
        %v1255 = vadd.f32 %v1215, %v1254
        %v1256 = vpop.f32.mrf.mxu0
        %v1257 = vadd.f32 %v1215, %v1256
        %1258 = vdwg.mxu0
        %vm1259 = vcmp.gt.f32.partialorder %v1250, 0.0
        %vm1260 = vcmp.gt.f32.partialorder %v1252, 0.0
        %vm1261 = vcmp.gt.f32.partialorder %v1255, 0.0
        %vm1262 = vcmp.gt.f32.partialorder %v1257, 0.0
        %v1263 = vmul.f32 %v1250, 0.01
        %v1264 = vmul.f32 %v1252, 0.01
        %v1265 = vmul.f32 %v1255, 0.01
        %v1266 = vmul.f32 %v1257, 0.01
        %v1267 = vsel %vm1259, %v1250, %v1263
        %v1268 = vsel %vm1260, %v1252, %v1264
        %v1269 = vsel %vm1261, %v1255, %v1265
        %v1270 = vsel %vm1262, %v1257, %v1266
        %v1271 = vpack.c.bf16 %v1268, %v1267
        %v1272 = vpack.c.bf16 %v1270, %v1269
        %1274 = vset.pattern.permute.xlu0 32
        %1275 = vperm.xlu0 %1274, %v334
        %v1276 = vpop.permute.xlu0 %1275
        %v1279 = vsel %vm370, %v333, 0
        %v1282 = vsel %vm370, %v1271, 0
        %v1285 = vsel %vm370, %v1272, 0
        %1287 = vmatpush.bf16.xpose.msra.mxu0 0
        %1288 = vmatpush.bf16.xpose.msra.mxu0 0
        %1289 = vmatpush.bf16.xpose.msra.mxu0 0
        %1290 = vmatpush.bf16.xpose.msra.mxu0 0
        %1291 = vmatpush.bf16.xpose.msra.mxu0 0
        %1292 = vmatpush.bf16.xpose.msra.mxu0 0
        %1293 = vmatpush.bf16.xpose.msra.mxu0 %v1285
        %1294 = vmatpush.bf16.xpose.msra.mxu0 %v1282
        %1295 = vmatmul.bf16.gmra.mxu0 %v1279
        %v1296 = vpop.f32.mrf.mxu0
        %v1297 = vadd.f32 %v1276, %v1296
        %v1298 = vpop.f32.mrf.mxu0
        %1299 = vdwg.mxu0
        %v1300 = vxor.u32 %v1297, 2147483648
        %v1301 = vmul.f32 %v1300, 1.442695
        %v1302 = vpow.pop %v1301
        %v1303 = vadd.f32 %v1302, 1.0
        %v1304 = vrcp.pop %v1303
        %v1305 = vmul.f32 %v1303, %v1304
        %v1306 = vsub.f32 1.0, %v1305
        %v1307 = vmul.f32 %v1304, %v1306
        %v1308 = vadd.f32 %v1304, %v1307
        %vm1309 = vweird.f32 %v1303
        %vm1310 = vweird.f32 %v1304
        %vm1311 = vmor %vm1309, %vm1310
        %v1312 = vsel %vm1311, %v1304, %v1308
        %v1313 = vand.u32 2147483647, %v1303
        %vm1314 = vcmp.eq.f32.partialorder %v1313, 8.507059e+37
        %v1315 = vand.u32 %v1303, 2147483648
        %v1316 = vor.u32 1.1754944e-38, %v1315
        %v1317 = vsel %vm1314, %v1316, %v1312
        %v1318 = vmul.f32 1.0, %v1317
        %v1319 = vsel %vm370, %v308, 0.0
        %v1320 = vsel %vm370, %v309, 0.0
        %v1321 = vadd.f32 %v1319, %v1320
        %v1322 = vsel %vm370, %v310, 0.0
        %v1323 = vadd.f32 %v1321, %v1322
        %v1324 = vsel %vm370, %v311, 0.0
        %v1325 = vadd.f32 %v1323, %v1324
        %v1326 = vrot.slane %v1325, 4
        %v1327 = vadd.f32 %v1325, %v1326
        %v1328 = vrot.slane %v1327, 2
        %v1329 = vadd.f32 %v1327, %v1328
        %v1330 = vrot.slane %v1329, 1
        %v1331 = vadd.f32 %v1329, %v1330
        %v1333 = vsel %vm370, %v1318, 0
        %1335 = vmatpush.msra.mxu0 0.0
        %1336 = vmatpush.msra.mxu0 0.0
        %1337 = vmatpush.msra.mxu0 0.0
        %1338 = vmatpush.msra.mxu0 0.0
        %1339 = vmatpush.msra.mxu0 0.0
        %1340 = vmatpush.msra.mxu0 0.0
        %1341 = vmatpush.msra.mxu0 0.0
        %1342 = vmatpush.msra.mxu0 0.0
        %1343 = vmatpush.msra.mxu0 0.0
        %1344 = vmatpush.msra.mxu0 0.0
        %1345 = vmatpush.msra.mxu0 0.0
        %1346 = vmatpush.msra.mxu0 0.0
        %1347 = vmatpush.msra.mxu0 %v311
        %1348 = vmatpush.msra.mxu0 %v310
        %1349 = vmatpush.msra.mxu0 %v309
        %1350 = vmatpush.msra.mxu0 %v308
        %1351 = vmatmul.f32.gmra.mxu0 %v1333
        %v1352 = vpop.f32.mrf.mxu0
        %v1353 = vadd.f32 0.0, %v1352
        %1354 = vdwg.mxu0
        %v1355 = vsub.f32 %v1331, %v1353
        %v1356 = vmul.f32 %v1318, %v1355
        %v1358 = vsel %vm370, %v1356, 0
        %1360 = vmatpush.msra.mxu0 0.0
        %1361 = vmatpush.msra.mxu0 0.0
        %1362 = vmatpush.msra.mxu0 0.0
        %1363 = vmatpush.msra.mxu0 0.0
        %1364 = vmatpush.msra.mxu0 0.0
        %1365 = vmatpush.msra.mxu0 0.0
        %1366 = vmatpush.msra.mxu0 0.0
        %1367 = vmatpush.msra.mxu0 0.0
        %1368 = vmatpush.msra.mxu0 0.0
        %1369 = vmatpush.msra.mxu0 0.0
        %1370 = vmatpush.msra.mxu0 0.0
        %1371 = vmatpush.msra.mxu0 0.0
        %1372 = vmatpush.msra.mxu0 %v315
        %1373 = vmatpush.msra.mxu0 %v314
        %1374 = vmatpush.msra.mxu0 %v313
        %1375 = vmatpush.msra.mxu0 %v312
        %1376 = vmatmul.f32.gmra.mxu0 %v1358
        %v1377 = vpop.f32.mrf.mxu0
        %v1378 = vadd.f32 0.0, %v1377
        %1379 = vdwg.mxu0
        %v1380 = vmul.f32 %v1378, -0.25
        %1382 = vrot.lane.b32.xlu0 %v1380, 32
        %v1383 = vpop.permute.xlu0 %1382
        %v1385 = vsel %vm370, %v1318, %v1383
        %vm1386 = vcmask 277504
        %v1387 = vsel %vm1386, %v1385, 0.0
        %1388 = vst [vmem:[%s278] sm:$0x1] %v1387
        %s1389 = sand.u32 %s153, 1
        %s1390 = scalar_lea.sflag [#allocation4], %s1389
        %s1391 = sand.u32 %s153, 1
        %s1392 = scalar_lea.vmem [#allocation5], %s1391
        // Predicated region
        $region45: #{tpu_custom_call.1} parent=39 // pred_check
          %p1393 = pneg %p163
        $region46: #{tpu_custom_call.1} parent=39 // pred_check_branch
          %1395 = sbr.rel (%p1393) target = $region48
        $region47: #{tpu_custom_call.1} parent=39 // pred_region
          %1397 = vsyncadd %s1390, 0
          %s1398 = scalar_lea.hbm %s5, %s20
          %s1400 = sshll.u32 %s1392, 4
          %s1401 = int_to_ptr.vmem [resolvable:$true] %s1400
          %s1402 = sshll.u32 %s1398, 4
          %s1403 = int_to_ptr.hbm [resolvable:$true] %s1402
          %1405 = dma.vmem_to_hbm [thread:$0]  %s1401, 16, %s1403, %s1390
        $region48: #{tpu_custom_call.1} parent=39 // pred_fallthru
          _
      $region40: #{tpu_custom_call.1} parent=5 // pred_fallthru
        _
      %p1406 = scmp.le.s32.totalorder 2, %s15
      // Predicated region
      $region49: #{tpu_custom_call.1} parent=5 // pred_check
        %p1407 = pneg %p1406
      $region50: #{tpu_custom_call.1} parent=5 // pred_check_branch
        %1409 = sbr.rel (%p1407) target = $region52
      $region51: #{tpu_custom_call.1} parent=5 // pred_region
        %s1410 = ssub.s32 %s15, 2
        // Predicated region
        $region53: #{tpu_custom_call.1} parent=51 // pred_check
          %p1411 = pneg %p169
        $region54: #{tpu_custom_call.1} parent=51 // pred_check_branch
          %1413 = sbr.rel (%p1411) target = $region56
        $region55: #{tpu_custom_call.1} parent=51 // pred_region
          %s1414 = sand.u32 %s154, 1
          %s1415 = scalar_lea.sflag [#allocation4], %s1414
          %s1416 = sand.u32 %s154, 1
          %s1417 = scalar_lea.vmem [#allocation5], %s1416
          %1419 = dma.done %s1415, 16
        $region56: #{tpu_custom_call.1} parent=51 // pred_fallthru
          _
      $region52: #{tpu_custom_call.1} parent=5 // pred_fallthru
        _
    $region6: #{tpu_custom_call.1} parent=1 // loop_footer
      %s19 = sadd.s32 1, %s15
    $region7: #{tpu_custom_call.1} parent=1 // loop_footer_branch
      %14 = sbr.rel target = $region3
    $region8: #{tpu_custom_call.1} parent=1 // loop_exit
      _
    %1420 = vsyncpa [#allocation3], 1
    %s1421 = scalar_lea.sflag [#allocation3], 1
    %1422 = vsyncpa %s1421, 1
    %1423 = vsyncpa [#allocation4], 1
    %s1424 = scalar_lea.sflag [#allocation4], 1
    %1425 = vsyncpa %s1424, 1

</llo_original>
